<compile_context>
chip_gen: v5e
topology: v5e:2x2
jax: 0.10.0
libtpu: 0.0.40
codegen_flags: <defaults>
</compile_context>

<pallas_src>
import functools

import jax
import jax.numpy as jnp
from jax.experimental import pallas as pl
from jax.experimental.pallas import tpu as pltpu


def _collision_kernel(*refs, apply_constraint: bool, Q: int, D: int, n_layers: int):
    if apply_constraint:
        fT_ref, uT_ref, xi_ref, w_ref, b_ref, out_ref = refs
    else:
        fT_ref, w_ref, b_ref, out_ref = refs
        uT_ref = xi_ref = None

    # ---- MLP hot path: activations are [feature, tile_n] (nodes fill the lanes) ----
    x = fT_ref[...].astype(jnp.float32)                       # [Q, tile_n]
    tile_n = x.shape[1]
    if D > Q:
        # Zero-pad the feature axis up to D so every layer is a uniform [D,D] @ [D,tile_n]
        # matmul against the padded weight slab (padding rows/cols are exact zeros).
        x = jnp.concatenate(
            [x, jnp.zeros((D - Q, tile_n), jnp.float32)], axis=0)   # [D, tile_n]

    mm_dtype = w_ref.dtype   # f32 by default; bf16 when use_bf16_matmul=True
    for k in range(n_layers):
        w_k = w_ref[k]                                        # [D, D]   (zero-padded W_k^T)
        b_k = b_ref[k]                                        # [D, 1]   (f32)
        x = jnp.dot(w_k, x.astype(mm_dtype),
                    preferred_element_type=jnp.float32) + b_k  # [D, tile_n], f32 accum
        x = jnp.maximum(x, 0.0) if k < n_layers - 1 else jnp.tanh(x)

    omega = x[:Q, :]                                          # [Q, tile_n]

    if apply_constraint:
        # ---- hard collision-invariance projection (f32, fused per node) ----
        u = uT_ref[...].astype(jnp.float32)                   # [1, tile_n]
        xi = xi_ref[...].astype(jnp.float32)                  # [Q, 1]
        wq = jnp.float32(1.0 / Q)
        c1 = wq * (xi + u)                                    # C[:,1,:] -> [Q, tile_n]

        # CCT (2x2, symmetric) + 1e-6 I, per node
        a = jnp.float32(Q) * wq * wq + jnp.float32(1e-6)                       # scalar
        bb = wq * jnp.sum(c1, axis=0, keepdims=True)                           # [1, tile_n]
        d = jnp.sum(c1 * c1, axis=0, keepdims=True) + jnp.float32(1e-6)        # [1, tile_n]
        inv_det = 1.0 / (a * d - bb * bb)                     # single reciprocal (exact)

        # y = C @ omega  (2-vector per node)
        y0 = wq * jnp.sum(omega, axis=0, keepdims=True)
        y1 = jnp.sum(c1 * omega, axis=0, keepdims=True)

        # z = (CCT)^{-1} y  via closed-form 2x2 inverse
        z0 = (d * y0 - bb * y1) * inv_det
        z1 = (a * y1 - bb * y0) * inv_det

        # omega* = omega - C^T z
        omega = omega - (wq * z0 + c1 * z1)

    out_ref[...] = omega.astype(out_ref.dtype)


def collision_operator(f, u, xi, weights, biases, *,
                       constraint_type: str = 'hard',
                       tile_n: int = 512,
                       use_bf16_matmul: bool = False):
    """f: [N, Q], u: [N, 1], xi: [Q]; weights[k]: [in_k, out_k], biases[k]: [out_k]."""
    N, Q = f.shape
    n_layers = len(weights)

    # Padded feature width D (>= every layer in/out dim, rounded to a sublane multiple).
    D = max([Q] + [w.shape[0] for w in weights] + [w.shape[1] for w in weights])
    D = ((D + 7) // 8) * 8

    tile_n = min(tile_n, N)
    assert N % tile_n == 0, "N must be divisible by tile_n"
    assert tile_n % 128 == 0 or tile_n == N, "tile_n should be a multiple of 128 (lane-dense)"

    # VMEM guardrail (v7x has only a 32 MiB scoped default / 64 MiB physical):
    # double-buffered streamed tiles + resident weight/bias slabs + activation scratch.
    vmem_est = (2 * (Q + 1 + Q) * tile_n * 4
                + 2 * n_layers * (D * D + D) * 4
                + 4 * D * tile_n * 4)
    assert vmem_est < 24 * 1024 * 1024, (
        "tile_n too large for the v7x scoped-VMEM default; reduce tile_n or set "
        "vmem_limit_bytes in pltpu.CompilerParams")

    apply_constraint = (constraint_type == 'hard')
    slab_dtype = jnp.bfloat16 if use_bf16_matmul else jnp.float32

    # Pack all layers into one padded weight slab [L, D, D] (stored transposed: W_k^T)
    # and one bias slab [L, D, 1].  Padding rows/cols are zero so the padded matmuls
    # reproduce the unpadded result exactly.
    w_slab = jnp.zeros((n_layers, D, D), slab_dtype)
    b_slab = jnp.zeros((n_layers, D, 1), jnp.float32)
    for k, (w, b) in enumerate(zip(weights, biases)):
        in_k, out_k = w.shape
        w_slab = w_slab.at[k, :out_k, :in_k].set(w.T.astype(slab_dtype))
        b_slab = b_slab.at[k, :out_k, 0].set(b.astype(jnp.float32))

    # Lane-dense presentation: node axis last (layout plumbing in the wrapper).
    fT = jnp.transpose(f)                        # [Q, N]

    full = lambda arr: pl.BlockSpec(arr.shape, lambda i, _nd=arr.ndim: (0,) * _nd)

    operands = [fT]
    in_specs = [pl.BlockSpec((Q, tile_n), lambda i: (0, i))]
    if apply_constraint:
        uT = jnp.transpose(u.reshape(N, 1))      # [1, N]
        xi_col = xi.reshape(Q, 1)                # [Q, 1]
        operands += [uT, xi_col]
        in_specs += [pl.BlockSpec((1, tile_n), lambda i: (0, i)), full(xi_col)]
    operands += [w_slab, b_slab]
    in_specs += [full(w_slab), full(b_slab)]

    kernel = functools.partial(_collision_kernel,
                               apply_constraint=apply_constraint,
                               Q=Q, D=D, n_layers=n_layers)

    outT = pl.pallas_call(
        kernel,
        out_shape=jax.ShapeDtypeStruct((Q, N), f.dtype),
        grid_spec=pltpu.PrefetchScalarGridSpec(
            num_scalar_prefetch=0,
            grid=(N // tile_n,),           # keep >= 4 steps for v7x megacore sharding
            in_specs=in_specs,
            out_specs=pl.BlockSpec((Q, tile_n), lambda i: (0, i)),
        ),
        compiler_params=pltpu.CompilerParams(dimension_semantics=("parallel",)),
    )(*operands)
    return jnp.transpose(outT)                   # back to [N, Q]


# ---- pure-JAX reference (mirrors the PyTorch forward exactly) ----
def collision_operator_ref(f, u, xi, weights, biases, constraint_type='hard'):
    x = f
    for k, (w, b) in enumerate(zip(weights, biases)):
        x = x @ w + b
        x = jnp.maximum(x, 0.0) if k < len(weights) - 1 else jnp.tanh(x)
    omega_raw = x
    if constraint_type != 'hard':
        return omega_raw
    N, Q = omega_raw.shape
    wq = jnp.ones((Q,)) / Q
    xi_shifted = xi[None, :] + u                       # [N, Q]
    C = jnp.stack([jnp.broadcast_to(wq, (N, Q)), wq * xi_shifted], axis=1)  # [N, 2, Q]
    CCT = C @ jnp.swapaxes(C, -1, -2) + 1e-6 * jnp.eye(2)[None]
    CCT_inv = jnp.linalg.inv(CCT)
    proj = jnp.eye(Q)[None] - jnp.swapaxes(C, -1, -2) @ CCT_inv @ C
    return jnp.einsum('nij,nj->ni', proj, omega_raw)


if __name__ == "__main__":
    # Q_mesoscale=8, hidden_dim=32, num_layers=5, N=2048 nodes (4 parallel grid steps
    # at tile_n=512), constraint_type='hard'.
    N, Q, H, L = 2048, 8, 32, 5
    key = jax.random.PRNGKey(0)
    keys = jax.random.split(key, 2 * L + 3)

    weights, biases = [], []
    for k in range(L):
        in_dim = Q if k == 0 else H
        out_dim = H if k < L - 1 else Q
        # deterministic init (Linear weight stored transposed: [in_dim, out_dim])
        weights.append(0.2 * jax.random.normal(keys[2 * k], (in_dim, out_dim), jnp.float32))
        biases.append(0.05 * jax.random.normal(keys[2 * k + 1], (out_dim,), jnp.float32))

    f = jax.random.normal(keys[-3], (N, Q), jnp.float32)
    u = 0.5 * jax.random.normal(keys[-2], (N, 1), jnp.float32)
    xi = jnp.linspace(-1.0, 1.0, Q, dtype=jnp.float32)   # xi_velocities buffer, [Q]

    # f32 path, hard constraint (matches PyTorch forward)
    out = collision_operator(f, u, xi, weights, biases, constraint_type='hard', tile_n=512)
    out = jax.block_until_ready(out)
    ref = collision_operator_ref(f, u, xi, weights, biases, 'hard')
    assert out.shape == (N, Q) and out.dtype == jnp.float32
    assert jnp.allclose(out, ref, atol=1e-5, rtol=1e-5), float(jnp.max(jnp.abs(out - ref)))

    # soft-constraint path: u / xi are dropped from the operand list entirely
    out_soft = collision_operator(f, u, xi, weights, biases, constraint_type='none', tile_n=512)
    ref_soft = collision_operator_ref(f, u, xi, weights, biases, 'none')
    assert jnp.allclose(jax.block_until_ready(out_soft), ref_soft, atol=1e-5, rtol=1e-5)

    # optional bf16-matmul path (v6e/v7x MXU rate); elementwise + constraint stay f32
    out_bf16 = collision_operator(f, u, xi, weights, biases, constraint_type='hard',
                                  tile_n=512, use_bf16_matmul=True)
    out_bf16 = jax.block_until_ready(out_bf16)
    assert jnp.all(jnp.isfinite(out_bf16))
    assert float(jnp.max(jnp.abs(out_bf16 - ref))) < 0.25   # loose: bf16 operands

    print("KERNEL_OK")
</pallas_src>

<mosaic_0001>
module attributes {stable_mosaic.version = 11 : i64} {
  func.func @_collision_kernel(%arg0: i32, %arg1: memref<8x512xf32, #tpu.memory_space<vmem>>, %arg2: memref<1x512xf32, #tpu.memory_space<vmem>>, %arg3: memref<8x1xf32, #tpu.memory_space<vmem>>, %arg4: memref<5x32x32xf32, #tpu.memory_space<vmem>>, %arg5: memref<5x32x1xf32, #tpu.memory_space<vmem>>, %arg6: memref<8x512xf32, #tpu.memory_space<vmem>>) attributes {dimension_semantics = [#tpu.dimension_semantics<parallel>], iteration_bounds = array<i64: 4>, scalar_prefetch = 0 : i64, scratch_operands = 0 : i64, tpu.core_type = #tpu.core_type<tc>, window_params = [{transform_indices = @transform_0, window_bounds = array<i64: 8, 512>}, {transform_indices = @transform_1, window_bounds = array<i64: 1, 512>}, {pipeline_mode = #tpu.pipeline_mode<synchronous>, transform_indices = @transform_2, window_bounds = array<i64: 8, 1>}, {pipeline_mode = #tpu.pipeline_mode<synchronous>, transform_indices = @transform_3, window_bounds = array<i64: 5, 32, 32>}, {pipeline_mode = #tpu.pipeline_mode<synchronous>, transform_indices = @transform_4, window_bounds = array<i64: 5, 32, 1>}, {transform_indices = @transform_5, window_bounds = array<i64: 8, 512>}]} {
    %c0 = arith.constant 0 : index
    %c0_0 = arith.constant 0 : index
    %0 = vector.load %arg1[%c0, %c0_0] : memref<8x512xf32, #tpu.memory_space<vmem>>, vector<8x512xf32>
    %cst = arith.constant 0.000000e+00 : f32
    %1 = vector.broadcast %cst : f32 to vector<24x512xf32>
    %2 = tpu.concatenate %0, %1 in 0 : vector<8x512xf32>, vector<24x512xf32> -> vector<32x512xf32>
    %c0_1 = arith.constant 0 : index
    %c0_2 = arith.constant 0 : index
    %c0_3 = arith.constant 0 : index
    %3 = vector.load %arg4[%c0_1, %c0_2, %c0_3] : memref<5x32x32xf32, #tpu.memory_space<vmem>>, vector<1x32x32xf32>
    %4 = vector.shape_cast %3 : vector<1x32x32xf32> to vector<32x32xf32>
    %c0_4 = arith.constant 0 : index
    %c0_5 = arith.constant 0 : index
    %c0_6 = arith.constant 0 : index
    %5 = vector.load %arg5[%c0_4, %c0_5, %c0_6] : memref<5x32x1xf32, #tpu.memory_space<vmem>>, vector<1x32x1xf32>
    %6 = vector.shape_cast %5 : vector<1x32x1xf32> to vector<32x1xf32>
    %cst_7 = arith.constant dense<0.000000e+00> : vector<32x512xf32>
    %7 = tpu.matmul %4, %2, %cst_7 {dimension_numbers = #tpu.dot_dimension_numbers<[1], [0], [0], [1], [0, 0, 1, 1], [], []>} : vector<32x32xf32>, vector<32x512xf32>, vector<32x512xf32> -> vector<32x512xf32>
    %8 = vector.broadcast %6 : vector<32x1xf32> to vector<32x512xf32>
    %9 = arith.addf %7, %8 : vector<32x512xf32>
    %cst_8 = arith.constant 0.000000e+00 : f32
    %10 = vector.broadcast %cst_8 : f32 to vector<32x512xf32>
    %11 = arith.maximumf %9, %10 : vector<32x512xf32>
    %c1 = arith.constant 1 : index
    %c0_9 = arith.constant 0 : index
    %c0_10 = arith.constant 0 : index
    %12 = vector.load %arg4[%c1, %c0_9, %c0_10] : memref<5x32x32xf32, #tpu.memory_space<vmem>>, vector<1x32x32xf32>
    %13 = vector.shape_cast %12 : vector<1x32x32xf32> to vector<32x32xf32>
    %c1_11 = arith.constant 1 : index
    %c0_12 = arith.constant 0 : index
    %c0_13 = arith.constant 0 : index
    %14 = vector.load %arg5[%c1_11, %c0_12, %c0_13] : memref<5x32x1xf32, #tpu.memory_space<vmem>>, vector<1x32x1xf32>
    %15 = vector.shape_cast %14 : vector<1x32x1xf32> to vector<32x1xf32>
    %cst_14 = arith.constant dense<0.000000e+00> : vector<32x512xf32>
    %16 = tpu.matmul %13, %11, %cst_14 {dimension_numbers = #tpu.dot_dimension_numbers<[1], [0], [0], [1], [0, 0, 1, 1], [], []>} : vector<32x32xf32>, vector<32x512xf32>, vector<32x512xf32> -> vector<32x512xf32>
    %17 = vector.broadcast %15 : vector<32x1xf32> to vector<32x512xf32>
    %18 = arith.addf %16, %17 : vector<32x512xf32>
    %cst_15 = arith.constant 0.000000e+00 : f32
    %19 = vector.broadcast %cst_15 : f32 to vector<32x512xf32>
    %20 = arith.maximumf %18, %19 : vector<32x512xf32>
    %c2 = arith.constant 2 : index
    %c0_16 = arith.constant 0 : index
    %c0_17 = arith.constant 0 : index
    %21 = vector.load %arg4[%c2, %c0_16, %c0_17] : memref<5x32x32xf32, #tpu.memory_space<vmem>>, vector<1x32x32xf32>
    %22 = vector.shape_cast %21 : vector<1x32x32xf32> to vector<32x32xf32>
    %c2_18 = arith.constant 2 : index
    %c0_19 = arith.constant 0 : index
    %c0_20 = arith.constant 0 : index
    %23 = vector.load %arg5[%c2_18, %c0_19, %c0_20] : memref<5x32x1xf32, #tpu.memory_space<vmem>>, vector<1x32x1xf32>
    %24 = vector.shape_cast %23 : vector<1x32x1xf32> to vector<32x1xf32>
    %cst_21 = arith.constant dense<0.000000e+00> : vector<32x512xf32>
    %25 = tpu.matmul %22, %20, %cst_21 {dimension_numbers = #tpu.dot_dimension_numbers<[1], [0], [0], [1], [0, 0, 1, 1], [], []>} : vector<32x32xf32>, vector<32x512xf32>, vector<32x512xf32> -> vector<32x512xf32>
    %26 = vector.broadcast %24 : vector<32x1xf32> to vector<32x512xf32>
    %27 = arith.addf %25, %26 : vector<32x512xf32>
    %cst_22 = arith.constant 0.000000e+00 : f32
    %28 = vector.broadcast %cst_22 : f32 to vector<32x512xf32>
    %29 = arith.maximumf %27, %28 : vector<32x512xf32>
    %c3 = arith.constant 3 : index
    %c0_23 = arith.constant 0 : index
    %c0_24 = arith.constant 0 : index
    %30 = vector.load %arg4[%c3, %c0_23, %c0_24] : memref<5x32x32xf32, #tpu.memory_space<vmem>>, vector<1x32x32xf32>
    %31 = vector.shape_cast %30 : vector<1x32x32xf32> to vector<32x32xf32>
    %c3_25 = arith.constant 3 : index
    %c0_26 = arith.constant 0 : index
    %c0_27 = arith.constant 0 : index
    %32 = vector.load %arg5[%c3_25, %c0_26, %c0_27] : memref<5x32x1xf32, #tpu.memory_space<vmem>>, vector<1x32x1xf32>
    %33 = vector.shape_cast %32 : vector<1x32x1xf32> to vector<32x1xf32>
    %cst_28 = arith.constant dense<0.000000e+00> : vector<32x512xf32>
    %34 = tpu.matmul %31, %29, %cst_28 {dimension_numbers = #tpu.dot_dimension_numbers<[1], [0], [0], [1], [0, 0, 1, 1], [], []>} : vector<32x32xf32>, vector<32x512xf32>, vector<32x512xf32> -> vector<32x512xf32>
    %35 = vector.broadcast %33 : vector<32x1xf32> to vector<32x512xf32>
    %36 = arith.addf %34, %35 : vector<32x512xf32>
    %cst_29 = arith.constant 0.000000e+00 : f32
    %37 = vector.broadcast %cst_29 : f32 to vector<32x512xf32>
    %38 = arith.maximumf %36, %37 : vector<32x512xf32>
    %c4 = arith.constant 4 : index
    %c0_30 = arith.constant 0 : index
    %c0_31 = arith.constant 0 : index
    %39 = vector.load %arg4[%c4, %c0_30, %c0_31] : memref<5x32x32xf32, #tpu.memory_space<vmem>>, vector<1x32x32xf32>
    %40 = vector.shape_cast %39 : vector<1x32x32xf32> to vector<32x32xf32>
    %c4_32 = arith.constant 4 : index
    %c0_33 = arith.constant 0 : index
    %c0_34 = arith.constant 0 : index
    %41 = vector.load %arg5[%c4_32, %c0_33, %c0_34] : memref<5x32x1xf32, #tpu.memory_space<vmem>>, vector<1x32x1xf32>
    %42 = vector.shape_cast %41 : vector<1x32x1xf32> to vector<32x1xf32>
    %cst_35 = arith.constant dense<0.000000e+00> : vector<32x512xf32>
    %43 = tpu.matmul %40, %38, %cst_35 {dimension_numbers = #tpu.dot_dimension_numbers<[1], [0], [0], [1], [0, 0, 1, 1], [], []>} : vector<32x32xf32>, vector<32x512xf32>, vector<32x512xf32> -> vector<32x512xf32>
    %44 = vector.broadcast %42 : vector<32x1xf32> to vector<32x512xf32>
    %45 = arith.addf %43, %44 : vector<32x512xf32>
    %46 = math.tanh %45 : vector<32x512xf32>
    %47 = vector.extract_strided_slice %46 {offsets = [0, 0], sizes = [8, 512], strides = [1, 1]} : vector<32x512xf32> to vector<8x512xf32>
    %c0_36 = arith.constant 0 : index
    %c0_37 = arith.constant 0 : index
    %48 = vector.load %arg2[%c0_36, %c0_37] : memref<1x512xf32, #tpu.memory_space<vmem>>, vector<1x512xf32>
    %c0_38 = arith.constant 0 : index
    %c0_39 = arith.constant 0 : index
    %49 = vector.load %arg3[%c0_38, %c0_39] : memref<8x1xf32, #tpu.memory_space<vmem>>, vector<8x1xf32>
    %50 = vector.broadcast %49 : vector<8x1xf32> to vector<8x512xf32>
    %51 = vector.broadcast %48 : vector<1x512xf32> to vector<8x512xf32>
    %52 = arith.addf %50, %51 : vector<8x512xf32>
    %cst_40 = arith.constant 1.250000e-01 : f32
    %53 = vector.broadcast %cst_40 : f32 to vector<8x512xf32>
    %54 = arith.mulf %53, %52 : vector<8x512xf32>
    %cst_41 = arith.constant 8.000000e+00 : f32
    %cst_42 = arith.constant 1.250000e-01 : f32
    %55 = arith.mulf %cst_41, %cst_42 : f32
    %cst_43 = arith.constant 1.250000e-01 : f32
    %56 = arith.mulf %55, %cst_43 : f32
    %cst_44 = arith.constant 9.99999997E-7 : f32
    %57 = arith.addf %56, %cst_44 : f32
    %cst_45 = arith.constant dense<0.000000e+00> : vector<512xf32>
    %58 = vector.multi_reduction <add>, %54, %cst_45 [0] : vector<8x512xf32> to vector<512xf32>
    %59 = vector.shape_cast %58 : vector<512xf32> to vector<1x512xf32>
    %cst_46 = arith.constant 1.250000e-01 : f32
    %60 = vector.broadcast %cst_46 : f32 to vector<1x512xf32>
    %61 = arith.mulf %60, %59 : vector<1x512xf32>
    %62 = arith.mulf %54, %54 : vector<8x512xf32>
    %cst_47 = arith.constant dense<0.000000e+00> : vector<512xf32>
    %63 = vector.multi_reduction <add>, %62, %cst_47 [0] : vector<8x512xf32> to vector<512xf32>
    %64 = vector.shape_cast %63 : vector<512xf32> to vector<1x512xf32>
    %cst_48 = arith.constant 9.99999997E-7 : f32
    %65 = vector.broadcast %cst_48 : f32 to vector<1x512xf32>
    %66 = arith.addf %64, %65 : vector<1x512xf32>
    %67 = vector.broadcast %57 : f32 to vector<1x512xf32>
    %68 = arith.mulf %67, %66 : vector<1x512xf32>
    %69 = arith.mulf %61, %61 : vector<1x512xf32>
    %70 = arith.subf %68, %69 : vector<1x512xf32>
    %cst_49 = arith.constant 1.000000e+00 : f32
    %71 = vector.broadcast %cst_49 : f32 to vector<1x512xf32>
    %72 = arith.divf %71, %70 : vector<1x512xf32>
    %cst_50 = arith.constant dense<0.000000e+00> : vector<512xf32>
    %73 = vector.multi_reduction <add>, %47, %cst_50 [0] : vector<8x512xf32> to vector<512xf32>
    %74 = vector.shape_cast %73 : vector<512xf32> to vector<1x512xf32>
    %cst_51 = arith.constant 1.250000e-01 : f32
    %75 = vector.broadcast %cst_51 : f32 to vector<1x512xf32>
    %76 = arith.mulf %75, %74 : vector<1x512xf32>
    %77 = arith.mulf %54, %47 : vector<8x512xf32>
    %cst_52 = arith.constant dense<0.000000e+00> : vector<512xf32>
    %78 = vector.multi_reduction <add>, %77, %cst_52 [0] : vector<8x512xf32> to vector<512xf32>
    %79 = vector.shape_cast %78 : vector<512xf32> to vector<1x512xf32>
    %80 = arith.mulf %66, %76 : vector<1x512xf32>
    %81 = arith.mulf %61, %79 : vector<1x512xf32>
    %82 = arith.subf %80, %81 : vector<1x512xf32>
    %83 = arith.mulf %82, %72 : vector<1x512xf32>
    %84 = vector.broadcast %57 : f32 to vector<1x512xf32>
    %85 = arith.mulf %84, %79 : vector<1x512xf32>
    %86 = arith.mulf %61, %76 : vector<1x512xf32>
    %87 = arith.subf %85, %86 : vector<1x512xf32>
    %88 = arith.mulf %87, %72 : vector<1x512xf32>
    %cst_53 = arith.constant 1.250000e-01 : f32
    %89 = vector.broadcast %cst_53 : f32 to vector<1x512xf32>
    %90 = arith.mulf %89, %83 : vector<1x512xf32>
    %91 = vector.broadcast %88 : vector<1x512xf32> to vector<8x512xf32>
    %92 = arith.mulf %54, %91 : vector<8x512xf32>
    %93 = vector.broadcast %90 : vector<1x512xf32> to vector<8x512xf32>
    %94 = arith.addf %93, %92 : vector<8x512xf32>
    %95 = arith.subf %47, %94 : vector<8x512xf32>
    %c0_54 = arith.constant 0 : index
    %c0_55 = arith.constant 0 : index
    %96 = vector.load %arg6[%c0_54, %c0_55] : memref<8x512xf32, #tpu.memory_space<vmem>>, vector<8x512xf32>
    tpu.vector_store %arg6[%c0_54, %c0_55], %95 {strides = array<i32>} : memref<8x512xf32, #tpu.memory_space<vmem>>, vector<8x512xf32>,
    return
  }
  func.func @transform_0(%arg0: i32) -> (i32, i32) {
    %c0_i32 = arith.constant 0 : i32
    %c0_i32_0 = arith.constant 0 : i32
    return %c0_i32, %arg0 : i32, i32
  }
  func.func @transform_1(%arg0: i32) -> (i32, i32) {
    %c0_i32 = arith.constant 0 : i32
    %c0_i32_0 = arith.constant 0 : i32
    return %c0_i32, %arg0 : i32, i32
  }
  func.func @transform_2(%arg0: i32) -> (i32, i32) {
    %c0_i32 = arith.constant 0 : i32
    %c0_i32_0 = arith.constant 0 : i32
    %c0_i32_1 = arith.constant 0 : i32
    return %c0_i32, %c0_i32_0 : i32, i32
  }
  func.func @transform_3(%arg0: i32) -> (i32, i32, i32) {
    %c0_i32 = arith.constant 0 : i32
    %c0_i32_0 = arith.constant 0 : i32
    %c0_i32_1 = arith.constant 0 : i32
    %c0_i32_2 = arith.constant 0 : i32
    return %c0_i32, %c0_i32_0, %c0_i32_1 : i32, i32, i32
  }
  func.func @transform_4(%arg0: i32) -> (i32, i32, i32) {
    %c0_i32 = arith.constant 0 : i32
    %c0_i32_0 = arith.constant 0 : i32
    %c0_i32_1 = arith.constant 0 : i32
    %c0_i32_2 = arith.constant 0 : i32
    return %c0_i32, %c0_i32_0, %c0_i32_1 : i32, i32, i32
  }
  func.func @transform_5(%arg0: i32) -> (i32, i32) {
    %c0_i32 = arith.constant 0 : i32
    %c0_i32_0 = arith.constant 0 : i32
    return %c0_i32, %arg0 : i32, i32
  }
}

</mosaic_0001>

<llo_original>
// kernel: tpu_custom_call.1
$region0: #{tpu_custom_call.1}
  #allocation0 [shape = 'u32[]', space=smem, size = 0x4, offset = 0x4, fixed_abs, tag = 'smem constant byte address 0x4 - core index']
  #allocation1 [shape = 'u32[72,128]{1,0:T(1,128)}', space=vmem, size = 0x9000, scoped, tag = 'internal scratch']
  %s0 = inlined_call_operand.hbm [shape: f32[8,2048], index: 0, kind: input, shape index: {}]
  %s1 = inlined_call_operand.hbm [shape: f32[1,2048], index: 1, kind: input, shape index: {}]
  %s2 = inlined_call_operand.vmem [shape: f32[8,1], index: 2, kind: input, shape index: {}]
  %s3 = inlined_call_operand.vmem [shape: f32[5,32,32], index: 3, kind: input, shape index: {}]
  %s4 = inlined_call_operand.vmem [shape: f32[5,32,1], index: 4, kind: input, shape index: {}]
  %s5 = inlined_call_operand.hbm [shape: f32[8,2048], index: 5, kind: output, shape index: {}]
  %s6 = sld [smem:[#allocation0]]
  $region61: #{tpu_custom_call.1} parent=0
    _
  %s8 = ssub.s32 1, %s6
  %s9 = scalar_select 0, %s8, %s6
  $region1: #{tpu_custom_call.1} parent=0
    #allocation2 [shape = 'u8[32768]{0}', space=vmem, size = 0x8000, scoped, tag = 'input window, operand 0']
    #allocation3 [shape = 's32[2]{0}', space=sflag, size = 0x8, scoped, tag = 'scoped memory for tpu_custom_call.1']
    #allocation4 [shape = 's32[2]{0}', space=sflag, size = 0x8, scoped, tag = 'scoped memory for tpu_custom_call.1']
    #allocation5 [shape = 'u8[4096]{0}', space=vmem, size = 0x1000, scoped, tag = 'input window, operand 1']
    #allocation6 [shape = 's32[2]{0}', space=sflag, size = 0x8, scoped, tag = 'scoped memory for tpu_custom_call.1']
    #allocation7 [shape = 'u8[32768]{0}', space=vmem, size = 0x8000, scoped, tag = 'output window, operand 0']
    %10 = vsyncpa [#allocation3], 0
    %s11 = scalar_lea.sflag [#allocation3], 1
    %12 = vsyncpa %s11, 0
    %13 = vsyncpa [#allocation6], 0
    %s14 = scalar_lea.sflag [#allocation6], 1
    %15 = vsyncpa %s14, 0
    %16 = vsyncpa [#allocation4], 0
    %s17 = scalar_lea.sflag [#allocation4], 1
    %18 = vsyncpa %s17, 0
    loop: start=0, step=1, limit=6
    $region2: #{tpu_custom_call.1} parent=1 // loop_pre_header
      _
    $region3: #{tpu_custom_call.1} parent=1 // loop_header
      %s20 = sphi 0, %s24
      %p21 = scmp.ge.s32.totalorder %s20, 6
      %s30 = sphi 0, %s32
      %s33 = sphi 0, %s30
      %s34 = sphi 0, %s33
      %s50 = sphi 0, %s34
      %s56 = sphi 0, %s58
      %s59 = sphi 0, %s56
      %s60 = sphi 0, %s59
      %s76 = sphi 0, %s60
      %s80 = sphi 0, %s80
      %s82 = sphi 0, %s80
      %s83 = sphi 0, %s82
      %s97 = sphi 0, %s83
      %s101 = sphi 0, %s101
      %s103 = sphi 0, %s101
      %s104 = sphi 0, %s103
      %s118 = sphi 0, %s104
      %s122 = sphi 0, %s122
      %s124 = sphi 0, %s122
      %s125 = sphi 0, %s124
      %s139 = sphi 0, %s125
      %s145 = sphi 0, %s147
      %s148 = sphi 0, %s145
      %s149 = sphi 0, %s148
      %s165 = sphi 0, %s149
    $region4: #{tpu_custom_call.1} parent=1 // loop_header_branch
      %23 = sbr.rel (%p21) target = $region8
    $region5: #{tpu_custom_call.1} parent=1 // loop_body
      %s25 = ssub.s32 %s20, 1
      %s26 = ssub.s32 %s20, 2
      %s27 = sadd.s32 %s20, 1
      %s28 = ssub.s32 %s20, %s27
      %p29 = scmp.eq.s32.totalorder %s28, 0
      %s31 = sadd.s32 %s30, 1
      %s32 = scalar_select %p29, %s30, %s31
      %p35 = pneg %p29
      %p36 = scmp.eq.s32.totalorder %s20, 3
      %p37 = por %p35, %p36
      %p38 = scmp.ne.s32.totalorder %s30, %s33
      %p39 = scmp.eq.s32.totalorder %s20, 0
      %p40 = por %p38, %p39
      %p41 = scmp.ne.s32.totalorder %s30, %s33
      %p42 = scmp.eq.s32.totalorder %s25, 3
      %p43 = por %p41, %p42
      %p44 = scmp.ne.s32.totalorder %s33, %s34
      %p45 = scmp.eq.s32.totalorder %s25, 0
      %p46 = por %p44, %p45
      %p47 = scmp.ne.s32.totalorder %s33, %s34
      %p48 = scmp.eq.s32.totalorder %s26, 3
      %p49 = por %p47, %p48
      %p51 = scmp.ne.s32.totalorder %s34, %s50
      %p52 = scmp.eq.s32.totalorder %s26, 0
      %p53 = por %p51, %p52
      %s54 = ssub.s32 %s20, %s27
      %p55 = scmp.eq.s32.totalorder %s54, 0
      %s57 = sadd.s32 %s56, 1
      %s58 = scalar_select %p55, %s56, %s57
      %p61 = pneg %p55
      %p62 = scmp.eq.s32.totalorder %s20, 3
      %p63 = por %p61, %p62
      %p64 = scmp.ne.s32.totalorder %s56, %s59
      %p65 = scmp.eq.s32.totalorder %s20, 0
      %p66 = por %p64, %p65
      %p67 = scmp.ne.s32.totalorder %s56, %s59
      %p68 = scmp.eq.s32.totalorder %s25, 3
      %p69 = por %p67, %p68
      %p70 = scmp.ne.s32.totalorder %s59, %s60
      %p71 = scmp.eq.s32.totalorder %s25, 0
      %p72 = por %p70, %p71
      %p73 = scmp.ne.s32.totalorder %s59, %s60
      %p74 = scmp.eq.s32.totalorder %s26, 3
      %p75 = por %p73, %p74
      %p77 = scmp.ne.s32.totalorder %s60, %s76
      %p78 = scmp.eq.s32.totalorder %s26, 0
      %p79 = por %p77, %p78
      %s81 = sadd.s32 %s80, 1
      %p84 = scmp.eq.s32.totalorder %s20, 3
      %p85 = scmp.ne.s32.totalorder %s80, %s82
      %p86 = scmp.eq.s32.totalorder %s20, 0
      %p87 = por %p85, %p86
      %p88 = scmp.ne.s32.totalorder %s80, %s82
      %p89 = scmp.eq.s32.totalorder %s25, 3
      %p90 = por %p88, %p89
      %p91 = scmp.ne.s32.totalorder %s82, %s83
      %p92 = scmp.eq.s32.totalorder %s25, 0
      %p93 = por %p91, %p92
      %p94 = scmp.ne.s32.totalorder %s82, %s83
      %p95 = scmp.eq.s32.totalorder %s26, 3
      %p96 = por %p94, %p95
      %p98 = scmp.ne.s32.totalorder %s83, %s97
      %p99 = scmp.eq.s32.totalorder %s26, 0
      %p100 = por %p98, %p99
      %s102 = sadd.s32 %s101, 1
      %p105 = scmp.eq.s32.totalorder %s20, 3
      %p106 = scmp.ne.s32.totalorder %s101, %s103
      %p107 = scmp.eq.s32.totalorder %s20, 0
      %p108 = por %p106, %p107
      %p109 = scmp.ne.s32.totalorder %s101, %s103
      %p110 = scmp.eq.s32.totalorder %s25, 3
      %p111 = por %p109, %p110
      %p112 = scmp.ne.s32.totalorder %s103, %s104
      %p113 = scmp.eq.s32.totalorder %s25, 0
      %p114 = por %p112, %p113
      %p115 = scmp.ne.s32.totalorder %s103, %s104
      %p116 = scmp.eq.s32.totalorder %s26, 3
      %p117 = por %p115, %p116
      %p119 = scmp.ne.s32.totalorder %s104, %s118
      %p120 = scmp.eq.s32.totalorder %s26, 0
      %p121 = por %p119, %p120
      %s123 = sadd.s32 %s122, 1
      %p126 = scmp.eq.s32.totalorder %s20, 3
      %p127 = scmp.ne.s32.totalorder %s122, %s124
      %p128 = scmp.eq.s32.totalorder %s20, 0
      %p129 = por %p127, %p128
      %p130 = scmp.ne.s32.totalorder %s122, %s124
      %p131 = scmp.eq.s32.totalorder %s25, 3
      %p132 = por %p130, %p131
      %p133 = scmp.ne.s32.totalorder %s124, %s125
      %p134 = scmp.eq.s32.totalorder %s25, 0
      %p135 = por %p133, %p134
      %p136 = scmp.ne.s32.totalorder %s124, %s125
      %p137 = scmp.eq.s32.totalorder %s26, 3
      %p138 = por %p136, %p137
      %p140 = scmp.ne.s32.totalorder %s125, %s139
      %p141 = scmp.eq.s32.totalorder %s26, 0
      %p142 = por %p140, %p141
      %s143 = ssub.s32 %s20, %s27
      %p144 = scmp.eq.s32.totalorder %s143, 0
      %s146 = sadd.s32 %s145, 1
      %s147 = scalar_select %p144, %s145, %s146
      %p150 = pneg %p144
      %p151 = scmp.eq.s32.totalorder %s20, 3
      %p152 = por %p150, %p151
      %p153 = scmp.ne.s32.totalorder %s145, %s148
      %p154 = scmp.eq.s32.totalorder %s20, 0
      %p155 = por %p153, %p154
      %p156 = scmp.ne.s32.totalorder %s145, %s148
      %p157 = scmp.eq.s32.totalorder %s25, 3
      %p158 = por %p156, %p157
      %p159 = scmp.ne.s32.totalorder %s148, %s149
      %p160 = scmp.eq.s32.totalorder %s25, 0
      %p161 = por %p159, %p160
      %p162 = scmp.ne.s32.totalorder %s148, %s149
      %p163 = scmp.eq.s32.totalorder %s26, 3
      %p164 = por %p162, %p163
      %p166 = scmp.ne.s32.totalorder %s149, %s165
      %p167 = scmp.eq.s32.totalorder %s26, 0
      %p168 = por %p166, %p167
      %p169 = scmp.le.s32.totalorder 1, %s20
      %p170 = scmp.lt.s32.totalorder %s20, 5
      %p171 = pnand %p169, %p170
      %p172 = pneg %p171
      // Predicated region
      $region9: #{tpu_custom_call.1} parent=5 // pred_check
        _
      $region10: #{tpu_custom_call.1} parent=5 // pred_check_branch
        %174 = sbr.rel (%p171) target = $region12
      $region11: #{tpu_custom_call.1} parent=5 // pred_region
        %s175 = ssub.s32 %s20, 1
        // Predicated region
        $region13: #{tpu_custom_call.1} parent=11 // pred_check
          %p176 = pneg %p93
        $region14: #{tpu_custom_call.1} parent=11 // pred_check_branch
          %178 = sbr.rel (%p176) target = $region16
        $region15: #{tpu_custom_call.1} parent=11 // pred_region
          _
        $region16: #{tpu_custom_call.1} parent=11 // pred_fallthru
          _
        // Predicated region
        $region17: #{tpu_custom_call.1} parent=11 // pred_check
          %p179 = pneg %p114
        $region18: #{tpu_custom_call.1} parent=11 // pred_check_branch
          %181 = sbr.rel (%p179) target = $region20
        $region19: #{tpu_custom_call.1} parent=11 // pred_region
          _
        $region20: #{tpu_custom_call.1} parent=11 // pred_fallthru
          _
        // Predicated region
        $region21: #{tpu_custom_call.1} parent=11 // pred_check
          %p182 = pneg %p135
        $region22: #{tpu_custom_call.1} parent=11 // pred_check_branch
          %184 = sbr.rel (%p182) target = $region24
        $region23: #{tpu_custom_call.1} parent=11 // pred_region
          _
        $region24: #{tpu_custom_call.1} parent=11 // pred_fallthru
          _
      $region12: #{tpu_custom_call.1} parent=5 // pred_fallthru
        _
      %p185 = scmp.lt.s32.totalorder %s20, 4
      // Predicated region
      $region25: #{tpu_custom_call.1} parent=5 // pred_check
        %p186 = pneg %p185
      $region26: #{tpu_custom_call.1} parent=5 // pred_check_branch
        %188 = sbr.rel (%p186) target = $region28
      $region27: #{tpu_custom_call.1} parent=5 // pred_region
        // Predicated region
        $region29: #{tpu_custom_call.1} parent=27 // pred_check
          %p189 = pneg %p40
        $region30: #{tpu_custom_call.1} parent=27 // pred_check_branch
          %191 = sbr.rel (%p189) target = $region32
        $region31: #{tpu_custom_call.1} parent=27 // pred_region
          %s192 = sand.u32 %s30, 1
          %s193 = scalar_lea.sflag [#allocation3], %s192
          %s194 = sand.u32 %s30, 1
          %s195 = smul.addr %s194, 32
          %s196 = scalar_lea.vmem [#allocation2], %s195
          %s197 = smul.u32 4, %s20
          %199 = vsyncadd %s193, 0
          %s200 = smul.addr %s197, 8
          %s201 = scalar_lea.hbm %s0, %s200
          %s203 = sshll.u32 %s201, 4
          %s204 = int_to_ptr.hbm [resolvable:$true] %s203
          %s205 = sshll.u32 %s196, 4
          %s206 = int_to_ptr.vmem [resolvable:$true] %s205
          %208 = dma.hbm_to_vmem [thread:$0]  %s204, 512, %s206, %s193
        $region32: #{tpu_custom_call.1} parent=27 // pred_fallthru
          _
        // Predicated region
        $region33: #{tpu_custom_call.1} parent=27 // pred_check
          %p209 = pneg %p66
        $region34: #{tpu_custom_call.1} parent=27 // pred_check_branch
          %211 = sbr.rel (%p209) target = $region36
        $region35: #{tpu_custom_call.1} parent=27 // pred_region
          %s212 = sand.u32 %s56, 1
          %s213 = scalar_lea.sflag [#allocation6], %s212
          %s214 = sand.u32 %s56, 1
          %s215 = smul.addr %s214, 4
          %s216 = scalar_lea.vmem [#allocation5], %s215
          %s217 = smul.u32 4, %s20
          %219 = vsyncadd %s213, 0
          %s220 = scalar_lea.hbm %s1, %s217
          %s222 = sshll.u32 %s220, 4
          %s223 = int_to_ptr.hbm [resolvable:$true] %s222
          %s224 = sshll.u32 %s216, 4
          %s225 = int_to_ptr.vmem [resolvable:$true] %s224
          %227 = dma.hbm_to_vmem [thread:$0]  %s223, 64, %s225, %s213
        $region36: #{tpu_custom_call.1} parent=27 // pred_fallthru
          _
      $region28: #{tpu_custom_call.1} parent=5 // pred_fallthru
        _
      %p228 = scmp.le.s32.totalorder 1, %s20
      %p229 = scmp.lt.s32.totalorder %s20, 5
      %p230 = pnand %p228, %p229
      %p231 = pneg %p230
      // Predicated region
      $region37: #{tpu_custom_call.1} parent=5 // pred_check
        _
      $region38: #{tpu_custom_call.1} parent=5 // pred_check_branch
        %233 = sbr.rel (%p230) target = $region40
      $region39: #{tpu_custom_call.1} parent=5 // pred_region
        %s234 = ssub.s32 %s20, 1
        %s235 = sand.u32 %s33, 1
        %s236 = scalar_lea.sflag [#allocation3], %s235
        %s237 = sand.u32 %s33, 1
        %s238 = smul.addr %s237, 32
        %s239 = scalar_lea.vmem [#allocation2], %s238
        // Predicated region
        $region41: #{tpu_custom_call.1} parent=39 // pred_check
          %p240 = pneg %p46
        $region42: #{tpu_custom_call.1} parent=39 // pred_check_branch
          %242 = sbr.rel (%p240) target = $region44
        $region43: #{tpu_custom_call.1} parent=39 // pred_region
          %244 = dma.done %s236, 512
        $region44: #{tpu_custom_call.1} parent=39 // pred_fallthru
          _
        %s245 = sand.u32 %s59, 1
        %s246 = scalar_lea.sflag [#allocation6], %s245
        %s247 = sand.u32 %s59, 1
        %s248 = smul.addr %s247, 4
        %s249 = scalar_lea.vmem [#allocation5], %s248
        // Predicated region
        $region45: #{tpu_custom_call.1} parent=39 // pred_check
          %p250 = pneg %p72
        $region46: #{tpu_custom_call.1} parent=39 // pred_check_branch
          %252 = sbr.rel (%p250) target = $region48
        $region47: #{tpu_custom_call.1} parent=39 // pred_region
          %254 = dma.done %s246, 64
        $region48: #{tpu_custom_call.1} parent=39 // pred_fallthru
          _
        %s255 = sand.u32 %s33, 1
        %s256 = scalar_lea.sflag [#allocation3], %s255
        %s257 = sand.u32 %s33, 1
        %s258 = smul.addr %s257, 32
        %s259 = scalar_lea.vmem [#allocation2], %s258
        %p260 = pneg %p46
        %p261 = pneg %p43
        %s262 = sand.u32 %s59, 1
        %s263 = scalar_lea.sflag [#allocation6], %s262
        %s264 = sand.u32 %s59, 1
        %s265 = smul.addr %s264, 4
        %s266 = scalar_lea.vmem [#allocation5], %s265
        %p267 = pneg %p72
        %p268 = pneg %p69
        %p269 = pneg %p93
        %p270 = pneg %p90
        %p271 = pneg %p114
        %p272 = pneg %p111
        %p273 = pneg %p135
        %p274 = pneg %p132
        %p275 = pneg %p161
        %p276 = pneg %p158
        %s277 = sand.u32 %s148, 1
        %s278 = scalar_lea.sflag [#allocation4], %s277
        %s279 = sand.u32 %s148, 1
        %s280 = smul.addr %s279, 32
        %s281 = scalar_lea.vmem [#allocation7], %s280
        %s282 = smul.u32 4, %s25
        %s283 = smul.u32 4, %s25
        %s284 = smul.u32 4, %s25
        %v285 = vld [vmem:[%s239] sm:$0xff]
        %v286 = vld [vmem:[%s239 + $0x8] sm:$0xff]
        %v287 = vld [vmem:[%s239 + $0x10] sm:$0xff]
        %v288 = vld [vmem:[%s239 + $0x18] sm:$0xff]
        %v289 = vld [vmem:[%s3] sm:$0xff]
        %v290 = vld [vmem:[%s3 + $0x8] sm:$0xff]
        %v291 = vld [vmem:[%s3 + $0x10] sm:$0xff]
        %v292 = vld [vmem:[%s3 + $0x18] sm:$0xff]
        %v293 = vld [vmem:[%s4] sm:$0xff]
        %v294 = vld [vmem:[%s4 + $0x8] sm:$0xff]
        %v295 = vld [vmem:[%s4 + $0x10] sm:$0xff]
        %v296 = vld [vmem:[%s4 + $0x18] sm:$0xff]
        %298 = vset.pattern.permute.xlu0 0
        %299 = vperm.xlu0 %298, %v293
        %v300 = vpop.permute.xlu0 %299
        %303 = vset.pattern.permute.xlu0 0
        %304 = vperm.xlu0 %303, %v294
        %v305 = vpop.permute.xlu0 %304
        %308 = vset.pattern.permute.xlu0 0
        %309 = vperm.xlu0 %308, %v295
        %v310 = vpop.permute.xlu0 %309
        %313 = vset.pattern.permute.xlu0 0
        %314 = vperm.xlu0 %313, %v296
        %v315 = vpop.permute.xlu0 %314
        %vm317 = vcmask 261120
        %v319 = vsel %vm317, %v289, 0
        %v322 = vsel %vm317, %v290, 0
        %v325 = vsel %vm317, %v291, 0
        %v328 = vsel %vm317, %v292, 0
        %330 = vmatpush.msra.mxu0 0.0
        %331 = vmatpush.msra.mxu0 0.0
        %332 = vmatpush.msra.mxu0 0.0
        %333 = vmatpush.msra.mxu0 0.0
        %334 = vmatpush.msra.mxu0 0.0
        %335 = vmatpush.msra.mxu0 0.0
        %336 = vmatpush.msra.mxu0 0.0
        %337 = vmatpush.msra.mxu0 0.0
        %338 = vmatpush.msra.mxu0 0.0
        %339 = vmatpush.msra.mxu0 0.0
        %340 = vmatpush.msra.mxu0 0.0
        %341 = vmatpush.msra.mxu0 0.0
        %342 = vmatpush.msra.mxu0 0.0
        %343 = vmatpush.msra.mxu0 0.0
        %344 = vmatpush.msra.mxu0 0.0
        %345 = vmatpush.msra.mxu0 %v285
        %346 = vmatmul.f32.gmra.mxu0 %v319
        %v347 = vpop.f32.mrf.mxu0
        %v348 = vadd.f32 %v300, %v347
        %349 = vmatmul.f32.gmra.mxu0 %v322
        %v350 = vpop.f32.mrf.mxu0
        %v351 = vadd.f32 %v305, %v350
        %352 = vmatmul.f32.gmra.mxu0 %v325
        %v353 = vpop.f32.mrf.mxu0
        %v354 = vadd.f32 %v310, %v353
        %355 = vmatmul.f32.gmra.mxu0 %v328
        %v356 = vpop.f32.mrf.mxu0
        %v357 = vadd.f32 %v315, %v356
        %358 = vdwg.mxu0
        %359 = vmatpush.msra.mxu0 0.0
        %360 = vmatpush.msra.mxu0 0.0
        %361 = vmatpush.msra.mxu0 0.0
        %362 = vmatpush.msra.mxu0 0.0
        %363 = vmatpush.msra.mxu0 0.0
        %364 = vmatpush.msra.mxu0 0.0
        %365 = vmatpush.msra.mxu0 0.0
        %366 = vmatpush.msra.mxu0 0.0
        %367 = vmatpush.msra.mxu0 0.0
        %368 = vmatpush.msra.mxu0 0.0
        %369 = vmatpush.msra.mxu0 0.0
        %370 = vmatpush.msra.mxu0 0.0
        %371 = vmatpush.msra.mxu0 0.0
        %372 = vmatpush.msra.mxu0 0.0
        %373 = vmatpush.msra.mxu0 0.0
        %374 = vmatpush.msra.mxu0 %v286
        %375 = vmatmul.f32.gmra.mxu0 %v319
        %v376 = vpop.f32.mrf.mxu0
        %v377 = vadd.f32 %v300, %v376
        %378 = vmatmul.f32.gmra.mxu0 %v322
        %v379 = vpop.f32.mrf.mxu0
        %v380 = vadd.f32 %v305, %v379
        %381 = vmatmul.f32.gmra.mxu0 %v325
        %v382 = vpop.f32.mrf.mxu0
        %v383 = vadd.f32 %v310, %v382
        %384 = vmatmul.f32.gmra.mxu0 %v328
        %v385 = vpop.f32.mrf.mxu0
        %v386 = vadd.f32 %v315, %v385
        %387 = vdwg.mxu0
        %388 = vmatpush.msra.mxu0 0.0
        %389 = vmatpush.msra.mxu0 0.0
        %390 = vmatpush.msra.mxu0 0.0
        %391 = vmatpush.msra.mxu0 0.0
        %392 = vmatpush.msra.mxu0 0.0
        %393 = vmatpush.msra.mxu0 0.0
        %394 = vmatpush.msra.mxu0 0.0
        %395 = vmatpush.msra.mxu0 0.0
        %396 = vmatpush.msra.mxu0 0.0
        %397 = vmatpush.msra.mxu0 0.0
        %398 = vmatpush.msra.mxu0 0.0
        %399 = vmatpush.msra.mxu0 0.0
        %400 = vmatpush.msra.mxu0 0.0
        %401 = vmatpush.msra.mxu0 0.0
        %402 = vmatpush.msra.mxu0 0.0
        %403 = vmatpush.msra.mxu0 %v287
        %404 = vmatmul.f32.gmra.mxu0 %v319
        %v405 = vpop.f32.mrf.mxu0
        %v406 = vadd.f32 %v300, %v405
        %407 = vmatmul.f32.gmra.mxu0 %v322
        %v408 = vpop.f32.mrf.mxu0
        %v409 = vadd.f32 %v305, %v408
        %410 = vmatmul.f32.gmra.mxu0 %v325
        %v411 = vpop.f32.mrf.mxu0
        %v412 = vadd.f32 %v310, %v411
        %413 = vmatmul.f32.gmra.mxu0 %v328
        %v414 = vpop.f32.mrf.mxu0
        %v415 = vadd.f32 %v315, %v414
        %416 = vdwg.mxu0
        %417 = vmatpush.msra.mxu0 0.0
        %418 = vmatpush.msra.mxu0 0.0
        %419 = vmatpush.msra.mxu0 0.0
        %420 = vmatpush.msra.mxu0 0.0
        %421 = vmatpush.msra.mxu0 0.0
        %422 = vmatpush.msra.mxu0 0.0
        %423 = vmatpush.msra.mxu0 0.0
        %424 = vmatpush.msra.mxu0 0.0
        %425 = vmatpush.msra.mxu0 0.0
        %426 = vmatpush.msra.mxu0 0.0
        %427 = vmatpush.msra.mxu0 0.0
        %428 = vmatpush.msra.mxu0 0.0
        %429 = vmatpush.msra.mxu0 0.0
        %430 = vmatpush.msra.mxu0 0.0
        %431 = vmatpush.msra.mxu0 0.0
        %432 = vmatpush.msra.mxu0 %v288
        %433 = vmatmul.f32.gmra.mxu0 %v319
        %v434 = vpop.f32.mrf.mxu0
        %v435 = vadd.f32 %v300, %v434
        %436 = vmatmul.f32.gmra.mxu0 %v322
        %v437 = vpop.f32.mrf.mxu0
        %v438 = vadd.f32 %v305, %v437
        %439 = vmatmul.f32.gmra.mxu0 %v325
        %v440 = vpop.f32.mrf.mxu0
        %v441 = vadd.f32 %v310, %v440
        %442 = vmatmul.f32.gmra.mxu0 %v328
        %v443 = vpop.f32.mrf.mxu0
        %v444 = vadd.f32 %v315, %v443
        %445 = vdwg.mxu0
        %v446 = vmax.f32 %v348, 0.0
        %v447 = vmax.f32 %v377, 0.0
        %v448 = vmax.f32 %v406, 0.0
        %v449 = vmax.f32 %v435, 0.0
        %v450 = vmax.f32 %v351, 0.0
        %v451 = vmax.f32 %v380, 0.0
        %v452 = vmax.f32 %v409, 0.0
        %v453 = vmax.f32 %v438, 0.0
        %v454 = vmax.f32 %v354, 0.0
        %v455 = vmax.f32 %v383, 0.0
        %v456 = vmax.f32 %v412, 0.0
        %v457 = vmax.f32 %v441, 0.0
        %v458 = vmax.f32 %v357, 0.0
        %v459 = vmax.f32 %v386, 0.0
        %v460 = vmax.f32 %v415, 0.0
        %v461 = vmax.f32 %v444, 0.0
        %s462 = scalar_lea.vmem %s3, 32
        %v463 = vld [vmem:[%s462] sm:$0xff]
        %v464 = vld [vmem:[%s462 + $0x8] sm:$0xff]
        %v465 = vld [vmem:[%s462 + $0x10] sm:$0xff]
        %v466 = vld [vmem:[%s462 + $0x18] sm:$0xff]
        %s467 = scalar_lea.vmem %s4, 32
        %v468 = vld [vmem:[%s467] sm:$0xff]
        %v469 = vld [vmem:[%s467 + $0x8] sm:$0xff]
        %v470 = vld [vmem:[%s467 + $0x10] sm:$0xff]
        %v471 = vld [vmem:[%s467 + $0x18] sm:$0xff]
        %473 = vset.pattern.permute.xlu0 0
        %474 = vperm.xlu0 %473, %v468
        %v475 = vpop.permute.xlu0 %474
        %478 = vset.pattern.permute.xlu0 0
        %479 = vperm.xlu0 %478, %v469
        %v480 = vpop.permute.xlu0 %479
        %483 = vset.pattern.permute.xlu0 0
        %484 = vperm.xlu0 %483, %v470
        %v485 = vpop.permute.xlu0 %484
        %488 = vset.pattern.permute.xlu0 0
        %489 = vperm.xlu0 %488, %v471
        %v490 = vpop.permute.xlu0 %489
        %v493 = vsel %vm317, %v463, 0
        %v496 = vsel %vm317, %v464, 0
        %v499 = vsel %vm317, %v465, 0
        %v502 = vsel %vm317, %v466, 0
        %504 = vmatpush.msra.mxu0 0.0
        %505 = vmatpush.msra.mxu0 0.0
        %506 = vmatpush.msra.mxu0 0.0
        %507 = vmatpush.msra.mxu0 0.0
        %508 = vmatpush.msra.mxu0 0.0
        %509 = vmatpush.msra.mxu0 0.0
        %510 = vmatpush.msra.mxu0 0.0
        %511 = vmatpush.msra.mxu0 0.0
        %512 = vmatpush.msra.mxu0 0.0
        %513 = vmatpush.msra.mxu0 0.0
        %514 = vmatpush.msra.mxu0 0.0
        %515 = vmatpush.msra.mxu0 0.0
        %516 = vmatpush.msra.mxu0 %v458
        %517 = vmatpush.msra.mxu0 %v454
        %518 = vmatpush.msra.mxu0 %v450
        %519 = vmatpush.msra.mxu0 %v446
        %520 = vmatmul.f32.gmra.mxu0 %v493
        %v521 = vpop.f32.mrf.mxu0
        %v522 = vadd.f32 %v475, %v521
        %523 = vmatmul.f32.gmra.mxu0 %v496
        %v524 = vpop.f32.mrf.mxu0
        %v525 = vadd.f32 %v480, %v524
        %526 = vmatmul.f32.gmra.mxu0 %v499
        %v527 = vpop.f32.mrf.mxu0
        %v528 = vadd.f32 %v485, %v527
        %529 = vmatmul.f32.gmra.mxu0 %v502
        %v530 = vpop.f32.mrf.mxu0
        %v531 = vadd.f32 %v490, %v530
        %532 = vdwg.mxu0
        %533 = vmatpush.msra.mxu0 0.0
        %534 = vmatpush.msra.mxu0 0.0
        %535 = vmatpush.msra.mxu0 0.0
        %536 = vmatpush.msra.mxu0 0.0
        %537 = vmatpush.msra.mxu0 0.0
        %538 = vmatpush.msra.mxu0 0.0
        %539 = vmatpush.msra.mxu0 0.0
        %540 = vmatpush.msra.mxu0 0.0
        %541 = vmatpush.msra.mxu0 0.0
        %542 = vmatpush.msra.mxu0 0.0
        %543 = vmatpush.msra.mxu0 0.0
        %544 = vmatpush.msra.mxu0 0.0
        %545 = vmatpush.msra.mxu0 %v459
        %546 = vmatpush.msra.mxu0 %v455
        %547 = vmatpush.msra.mxu0 %v451
        %548 = vmatpush.msra.mxu0 %v447
        %549 = vmatmul.f32.gmra.mxu0 %v493
        %v550 = vpop.f32.mrf.mxu0
        %v551 = vadd.f32 %v475, %v550
        %552 = vmatmul.f32.gmra.mxu0 %v496
        %v553 = vpop.f32.mrf.mxu0
        %v554 = vadd.f32 %v480, %v553
        %555 = vmatmul.f32.gmra.mxu0 %v499
        %v556 = vpop.f32.mrf.mxu0
        %v557 = vadd.f32 %v485, %v556
        %558 = vmatmul.f32.gmra.mxu0 %v502
        %v559 = vpop.f32.mrf.mxu0
        %v560 = vadd.f32 %v490, %v559
        %561 = vdwg.mxu0
        %562 = vmatpush.msra.mxu0 0.0
        %563 = vmatpush.msra.mxu0 0.0
        %564 = vmatpush.msra.mxu0 0.0
        %565 = vmatpush.msra.mxu0 0.0
        %566 = vmatpush.msra.mxu0 0.0
        %567 = vmatpush.msra.mxu0 0.0
        %568 = vmatpush.msra.mxu0 0.0
        %569 = vmatpush.msra.mxu0 0.0
        %570 = vmatpush.msra.mxu0 0.0
        %571 = vmatpush.msra.mxu0 0.0
        %572 = vmatpush.msra.mxu0 0.0
        %573 = vmatpush.msra.mxu0 0.0
        %574 = vmatpush.msra.mxu0 %v460
        %575 = vmatpush.msra.mxu0 %v456
        %576 = vmatpush.msra.mxu0 %v452
        %577 = vmatpush.msra.mxu0 %v448
        %578 = vmatmul.f32.gmra.mxu0 %v493
        %v579 = vpop.f32.mrf.mxu0
        %v580 = vadd.f32 %v475, %v579
        %581 = vmatmul.f32.gmra.mxu0 %v496
        %v582 = vpop.f32.mrf.mxu0
        %v583 = vadd.f32 %v480, %v582
        %584 = vmatmul.f32.gmra.mxu0 %v499
        %v585 = vpop.f32.mrf.mxu0
        %v586 = vadd.f32 %v485, %v585
        %587 = vmatmul.f32.gmra.mxu0 %v502
        %v588 = vpop.f32.mrf.mxu0
        %v589 = vadd.f32 %v490, %v588
        %590 = vdwg.mxu0
        %591 = vmatpush.msra.mxu0 0.0
        %592 = vmatpush.msra.mxu0 0.0
        %593 = vmatpush.msra.mxu0 0.0
        %594 = vmatpush.msra.mxu0 0.0
        %595 = vmatpush.msra.mxu0 0.0
        %596 = vmatpush.msra.mxu0 0.0
        %597 = vmatpush.msra.mxu0 0.0
        %598 = vmatpush.msra.mxu0 0.0
        %599 = vmatpush.msra.mxu0 0.0
        %600 = vmatpush.msra.mxu0 0.0
        %601 = vmatpush.msra.mxu0 0.0
        %602 = vmatpush.msra.mxu0 0.0
        %603 = vmatpush.msra.mxu0 %v461
        %604 = vmatpush.msra.mxu0 %v457
        %605 = vmatpush.msra.mxu0 %v453
        %606 = vmatpush.msra.mxu0 %v449
        %607 = vmatmul.f32.gmra.mxu0 %v493
        %v608 = vpop.f32.mrf.mxu0
        %v609 = vadd.f32 %v475, %v608
        %610 = vmatmul.f32.gmra.mxu0 %v496
        %v611 = vpop.f32.mrf.mxu0
        %v612 = vadd.f32 %v480, %v611
        %613 = vmatmul.f32.gmra.mxu0 %v499
        %v614 = vpop.f32.mrf.mxu0
        %v615 = vadd.f32 %v485, %v614
        %616 = vmatmul.f32.gmra.mxu0 %v502
        %v617 = vpop.f32.mrf.mxu0
        %v618 = vadd.f32 %v490, %v617
        %619 = vdwg.mxu0
        %v620 = vmax.f32 %v522, 0.0
        %v621 = vmax.f32 %v551, 0.0
        %v622 = vmax.f32 %v580, 0.0
        %v623 = vmax.f32 %v609, 0.0
        %v624 = vmax.f32 %v525, 0.0
        %v625 = vmax.f32 %v554, 0.0
        %v626 = vmax.f32 %v583, 0.0
        %v627 = vmax.f32 %v612, 0.0
        %v628 = vmax.f32 %v528, 0.0
        %v629 = vmax.f32 %v557, 0.0
        %v630 = vmax.f32 %v586, 0.0
        %v631 = vmax.f32 %v615, 0.0
        %v632 = vmax.f32 %v531, 0.0
        %v633 = vmax.f32 %v560, 0.0
        %v634 = vmax.f32 %v589, 0.0
        %v635 = vmax.f32 %v618, 0.0
        %s636 = scalar_lea.vmem %s3, 64
        %v637 = vld [vmem:[%s636] sm:$0xff]
        %v638 = vld [vmem:[%s636 + $0x8] sm:$0xff]
        %v639 = vld [vmem:[%s636 + $0x10] sm:$0xff]
        %v640 = vld [vmem:[%s636 + $0x18] sm:$0xff]
        %s641 = scalar_lea.vmem %s4, 64
        %v642 = vld [vmem:[%s641] sm:$0xff]
        %v643 = vld [vmem:[%s641 + $0x8] sm:$0xff]
        %v644 = vld [vmem:[%s641 + $0x10] sm:$0xff]
        %v645 = vld [vmem:[%s641 + $0x18] sm:$0xff]
        %647 = vset.pattern.permute.xlu0 0
        %648 = vperm.xlu0 %647, %v642
        %v649 = vpop.permute.xlu0 %648
        %652 = vset.pattern.permute.xlu0 0
        %653 = vperm.xlu0 %652, %v643
        %v654 = vpop.permute.xlu0 %653
        %657 = vset.pattern.permute.xlu0 0
        %658 = vperm.xlu0 %657, %v644
        %v659 = vpop.permute.xlu0 %658
        %662 = vset.pattern.permute.xlu0 0
        %663 = vperm.xlu0 %662, %v645
        %v664 = vpop.permute.xlu0 %663
        %v667 = vsel %vm317, %v637, 0
        %v670 = vsel %vm317, %v638, 0
        %v673 = vsel %vm317, %v639, 0
        %v676 = vsel %vm317, %v640, 0
        %678 = vmatpush.msra.mxu0 0.0
        %679 = vmatpush.msra.mxu0 0.0
        %680 = vmatpush.msra.mxu0 0.0
        %681 = vmatpush.msra.mxu0 0.0
        %682 = vmatpush.msra.mxu0 0.0
        %683 = vmatpush.msra.mxu0 0.0
        %684 = vmatpush.msra.mxu0 0.0
        %685 = vmatpush.msra.mxu0 0.0
        %686 = vmatpush.msra.mxu0 0.0
        %687 = vmatpush.msra.mxu0 0.0
        %688 = vmatpush.msra.mxu0 0.0
        %689 = vmatpush.msra.mxu0 0.0
        %690 = vmatpush.msra.mxu0 %v632
        %691 = vmatpush.msra.mxu0 %v628
        %692 = vmatpush.msra.mxu0 %v624
        %693 = vmatpush.msra.mxu0 %v620
        %694 = vmatmul.f32.gmra.mxu0 %v667
        %v695 = vpop.f32.mrf.mxu0
        %v696 = vadd.f32 %v649, %v695
        %697 = vmatmul.f32.gmra.mxu0 %v670
        %v698 = vpop.f32.mrf.mxu0
        %v699 = vadd.f32 %v654, %v698
        %700 = vmatmul.f32.gmra.mxu0 %v673
        %v701 = vpop.f32.mrf.mxu0
        %v702 = vadd.f32 %v659, %v701
        %703 = vmatmul.f32.gmra.mxu0 %v676
        %v704 = vpop.f32.mrf.mxu0
        %v705 = vadd.f32 %v664, %v704
        %706 = vdwg.mxu0
        %707 = vmatpush.msra.mxu0 0.0
        %708 = vmatpush.msra.mxu0 0.0
        %709 = vmatpush.msra.mxu0 0.0
        %710 = vmatpush.msra.mxu0 0.0
        %711 = vmatpush.msra.mxu0 0.0
        %712 = vmatpush.msra.mxu0 0.0
        %713 = vmatpush.msra.mxu0 0.0
        %714 = vmatpush.msra.mxu0 0.0
        %715 = vmatpush.msra.mxu0 0.0
        %716 = vmatpush.msra.mxu0 0.0
        %717 = vmatpush.msra.mxu0 0.0
        %718 = vmatpush.msra.mxu0 0.0
        %719 = vmatpush.msra.mxu0 %v633
        %720 = vmatpush.msra.mxu0 %v629
        %721 = vmatpush.msra.mxu0 %v625
        %722 = vmatpush.msra.mxu0 %v621
        %723 = vmatmul.f32.gmra.mxu0 %v667
        %v724 = vpop.f32.mrf.mxu0
        %v725 = vadd.f32 %v649, %v724
        %726 = vmatmul.f32.gmra.mxu0 %v670
        %v727 = vpop.f32.mrf.mxu0
        %v728 = vadd.f32 %v654, %v727
        %729 = vmatmul.f32.gmra.mxu0 %v673
        %v730 = vpop.f32.mrf.mxu0
        %v731 = vadd.f32 %v659, %v730
        %732 = vmatmul.f32.gmra.mxu0 %v676
        %v733 = vpop.f32.mrf.mxu0
        %v734 = vadd.f32 %v664, %v733
        %735 = vdwg.mxu0
        %736 = vmatpush.msra.mxu0 0.0
        %737 = vmatpush.msra.mxu0 0.0
        %738 = vmatpush.msra.mxu0 0.0
        %739 = vmatpush.msra.mxu0 0.0
        %740 = vmatpush.msra.mxu0 0.0
        %741 = vmatpush.msra.mxu0 0.0
        %742 = vmatpush.msra.mxu0 0.0
        %743 = vmatpush.msra.mxu0 0.0
        %744 = vmatpush.msra.mxu0 0.0
        %745 = vmatpush.msra.mxu0 0.0
        %746 = vmatpush.msra.mxu0 0.0
        %747 = vmatpush.msra.mxu0 0.0
        %748 = vmatpush.msra.mxu0 %v634
        %749 = vmatpush.msra.mxu0 %v630
        %750 = vmatpush.msra.mxu0 %v626
        %751 = vmatpush.msra.mxu0 %v622
        %752 = vmatmul.f32.gmra.mxu0 %v667
        %v753 = vpop.f32.mrf.mxu0
        %v754 = vadd.f32 %v649, %v753
        %755 = vmatmul.f32.gmra.mxu0 %v670
        %v756 = vpop.f32.mrf.mxu0
        %v757 = vadd.f32 %v654, %v756
        %758 = vmatmul.f32.gmra.mxu0 %v673
        %v759 = vpop.f32.mrf.mxu0
        %v760 = vadd.f32 %v659, %v759
        %761 = vmatmul.f32.gmra.mxu0 %v676
        %v762 = vpop.f32.mrf.mxu0
        %v763 = vadd.f32 %v664, %v762
        %764 = vdwg.mxu0
        %765 = vmatpush.msra.mxu0 0.0
        %766 = vmatpush.msra.mxu0 0.0
        %767 = vmatpush.msra.mxu0 0.0
        %768 = vmatpush.msra.mxu0 0.0
        %769 = vmatpush.msra.mxu0 0.0
        %770 = vmatpush.msra.mxu0 0.0
        %771 = vmatpush.msra.mxu0 0.0
        %772 = vmatpush.msra.mxu0 0.0
        %773 = vmatpush.msra.mxu0 0.0
        %774 = vmatpush.msra.mxu0 0.0
        %775 = vmatpush.msra.mxu0 0.0
        %776 = vmatpush.msra.mxu0 0.0
        %777 = vmatpush.msra.mxu0 %v635
        %778 = vmatpush.msra.mxu0 %v631
        %779 = vmatpush.msra.mxu0 %v627
        %780 = vmatpush.msra.mxu0 %v623
        %781 = vmatmul.f32.gmra.mxu0 %v667
        %v782 = vpop.f32.mrf.mxu0
        %v783 = vadd.f32 %v649, %v782
        %784 = vmatmul.f32.gmra.mxu0 %v670
        %v785 = vpop.f32.mrf.mxu0
        %v786 = vadd.f32 %v654, %v785
        %787 = vmatmul.f32.gmra.mxu0 %v673
        %v788 = vpop.f32.mrf.mxu0
        %v789 = vadd.f32 %v659, %v788
        %790 = vmatmul.f32.gmra.mxu0 %v676
        %v791 = vpop.f32.mrf.mxu0
        %v792 = vadd.f32 %v664, %v791
        %793 = vdwg.mxu0
        %v794 = vmax.f32 %v696, 0.0
        %v795 = vmax.f32 %v725, 0.0
        %v796 = vmax.f32 %v754, 0.0
        %v797 = vmax.f32 %v783, 0.0
        %v798 = vmax.f32 %v699, 0.0
        %v799 = vmax.f32 %v728, 0.0
        %v800 = vmax.f32 %v757, 0.0
        %v801 = vmax.f32 %v786, 0.0
        %v802 = vmax.f32 %v702, 0.0
        %v803 = vmax.f32 %v731, 0.0
        %v804 = vmax.f32 %v760, 0.0
        %v805 = vmax.f32 %v789, 0.0
        %v806 = vmax.f32 %v705, 0.0
        %v807 = vmax.f32 %v734, 0.0
        %v808 = vmax.f32 %v763, 0.0
        %v809 = vmax.f32 %v792, 0.0
        %s810 = scalar_lea.vmem %s3, 96
        %v811 = vld [vmem:[%s810] sm:$0xff]
        %v812 = vld [vmem:[%s810 + $0x8] sm:$0xff]
        %v813 = vld [vmem:[%s810 + $0x10] sm:$0xff]
        %v814 = vld [vmem:[%s810 + $0x18] sm:$0xff]
        %s815 = scalar_lea.vmem %s4, 96
        %v816 = vld [vmem:[%s815] sm:$0xff]
        %v817 = vld [vmem:[%s815 + $0x8] sm:$0xff]
        %v818 = vld [vmem:[%s815 + $0x10] sm:$0xff]
        %v819 = vld [vmem:[%s815 + $0x18] sm:$0xff]
        %821 = vset.pattern.permute.xlu0 0
        %822 = vperm.xlu0 %821, %v816
        %v823 = vpop.permute.xlu0 %822
        %826 = vset.pattern.permute.xlu0 0
        %827 = vperm.xlu0 %826, %v817
        %v828 = vpop.permute.xlu0 %827
        %831 = vset.pattern.permute.xlu0 0
        %832 = vperm.xlu0 %831, %v818
        %v833 = vpop.permute.xlu0 %832
        %836 = vset.pattern.permute.xlu0 0
        %837 = vperm.xlu0 %836, %v819
        %v838 = vpop.permute.xlu0 %837
        %v841 = vsel %vm317, %v811, 0
        %v844 = vsel %vm317, %v812, 0
        %v847 = vsel %vm317, %v813, 0
        %v850 = vsel %vm317, %v814, 0
        %852 = vmatpush.msra.mxu0 0.0
        %853 = vmatpush.msra.mxu0 0.0
        %854 = vmatpush.msra.mxu0 0.0
        %855 = vmatpush.msra.mxu0 0.0
        %856 = vmatpush.msra.mxu0 0.0
        %857 = vmatpush.msra.mxu0 0.0
        %858 = vmatpush.msra.mxu0 0.0
        %859 = vmatpush.msra.mxu0 0.0
        %860 = vmatpush.msra.mxu0 0.0
        %861 = vmatpush.msra.mxu0 0.0
        %862 = vmatpush.msra.mxu0 0.0
        %863 = vmatpush.msra.mxu0 0.0
        %864 = vmatpush.msra.mxu0 %v806
        %865 = vmatpush.msra.mxu0 %v802
        %866 = vmatpush.msra.mxu0 %v798
        %867 = vmatpush.msra.mxu0 %v794
        %868 = vmatmul.f32.gmra.mxu0 %v841
        %v869 = vpop.f32.mrf.mxu0
        %v870 = vadd.f32 %v823, %v869
        %871 = vmatmul.f32.gmra.mxu0 %v844
        %v872 = vpop.f32.mrf.mxu0
        %v873 = vadd.f32 %v828, %v872
        %874 = vmatmul.f32.gmra.mxu0 %v847
        %v875 = vpop.f32.mrf.mxu0
        %v876 = vadd.f32 %v833, %v875
        %877 = vmatmul.f32.gmra.mxu0 %v850
        %v878 = vpop.f32.mrf.mxu0
        %v879 = vadd.f32 %v838, %v878
        %880 = vdwg.mxu0
        %881 = vmatpush.msra.mxu0 0.0
        %882 = vmatpush.msra.mxu0 0.0
        %883 = vmatpush.msra.mxu0 0.0
        %884 = vmatpush.msra.mxu0 0.0
        %885 = vmatpush.msra.mxu0 0.0
        %886 = vmatpush.msra.mxu0 0.0
        %887 = vmatpush.msra.mxu0 0.0
        %888 = vmatpush.msra.mxu0 0.0
        %889 = vmatpush.msra.mxu0 0.0
        %890 = vmatpush.msra.mxu0 0.0
        %891 = vmatpush.msra.mxu0 0.0
        %892 = vmatpush.msra.mxu0 0.0
        %893 = vmatpush.msra.mxu0 %v807
        %894 = vmatpush.msra.mxu0 %v803
        %895 = vmatpush.msra.mxu0 %v799
        %896 = vmatpush.msra.mxu0 %v795
        %897 = vmatmul.f32.gmra.mxu0 %v841
        %v898 = vpop.f32.mrf.mxu0
        %v899 = vadd.f32 %v823, %v898
        %900 = vmatmul.f32.gmra.mxu0 %v844
        %v901 = vpop.f32.mrf.mxu0
        %v902 = vadd.f32 %v828, %v901
        %903 = vmatmul.f32.gmra.mxu0 %v847
        %v904 = vpop.f32.mrf.mxu0
        %v905 = vadd.f32 %v833, %v904
        %906 = vmatmul.f32.gmra.mxu0 %v850
        %v907 = vpop.f32.mrf.mxu0
        %v908 = vadd.f32 %v838, %v907
        %909 = vdwg.mxu0
        %910 = vmatpush.msra.mxu0 0.0
        %911 = vmatpush.msra.mxu0 0.0
        %912 = vmatpush.msra.mxu0 0.0
        %913 = vmatpush.msra.mxu0 0.0
        %914 = vmatpush.msra.mxu0 0.0
        %915 = vmatpush.msra.mxu0 0.0
        %916 = vmatpush.msra.mxu0 0.0
        %917 = vmatpush.msra.mxu0 0.0
        %918 = vmatpush.msra.mxu0 0.0
        %919 = vmatpush.msra.mxu0 0.0
        %920 = vmatpush.msra.mxu0 0.0
        %921 = vmatpush.msra.mxu0 0.0
        %922 = vmatpush.msra.mxu0 %v808
        %923 = vmatpush.msra.mxu0 %v804
        %924 = vmatpush.msra.mxu0 %v800
        %925 = vmatpush.msra.mxu0 %v796
        %926 = vmatmul.f32.gmra.mxu0 %v841
        %v927 = vpop.f32.mrf.mxu0
        %v928 = vadd.f32 %v823, %v927
        %929 = vmatmul.f32.gmra.mxu0 %v844
        %v930 = vpop.f32.mrf.mxu0
        %v931 = vadd.f32 %v828, %v930
        %932 = vmatmul.f32.gmra.mxu0 %v847
        %v933 = vpop.f32.mrf.mxu0
        %v934 = vadd.f32 %v833, %v933
        %935 = vmatmul.f32.gmra.mxu0 %v850
        %v936 = vpop.f32.mrf.mxu0
        %v937 = vadd.f32 %v838, %v936
        %938 = vdwg.mxu0
        %939 = vmatpush.msra.mxu0 0.0
        %940 = vmatpush.msra.mxu0 0.0
        %941 = vmatpush.msra.mxu0 0.0
        %942 = vmatpush.msra.mxu0 0.0
        %943 = vmatpush.msra.mxu0 0.0
        %944 = vmatpush.msra.mxu0 0.0
        %945 = vmatpush.msra.mxu0 0.0
        %946 = vmatpush.msra.mxu0 0.0
        %947 = vmatpush.msra.mxu0 0.0
        %948 = vmatpush.msra.mxu0 0.0
        %949 = vmatpush.msra.mxu0 0.0
        %950 = vmatpush.msra.mxu0 0.0
        %951 = vmatpush.msra.mxu0 %v809
        %952 = vmatpush.msra.mxu0 %v805
        %953 = vmatpush.msra.mxu0 %v801
        %954 = vmatpush.msra.mxu0 %v797
        %955 = vmatmul.f32.gmra.mxu0 %v841
        %v956 = vpop.f32.mrf.mxu0
        %v957 = vadd.f32 %v823, %v956
        %958 = vmatmul.f32.gmra.mxu0 %v844
        %v959 = vpop.f32.mrf.mxu0
        %v960 = vadd.f32 %v828, %v959
        %961 = vmatmul.f32.gmra.mxu0 %v847
        %v962 = vpop.f32.mrf.mxu0
        %v963 = vadd.f32 %v833, %v962
        %964 = vmatmul.f32.gmra.mxu0 %v850
        %v965 = vpop.f32.mrf.mxu0
        %v966 = vadd.f32 %v838, %v965
        %967 = vdwg.mxu0
        %v968 = vmax.f32 %v870, 0.0
        %v969 = vmax.f32 %v899, 0.0
        %v970 = vmax.f32 %v928, 0.0
        %v971 = vmax.f32 %v957, 0.0
        %v972 = vmax.f32 %v873, 0.0
        %v973 = vmax.f32 %v902, 0.0
        %v974 = vmax.f32 %v931, 0.0
        %v975 = vmax.f32 %v960, 0.0
        %v976 = vmax.f32 %v876, 0.0
        %v977 = vmax.f32 %v905, 0.0
        %v978 = vmax.f32 %v934, 0.0
        %v979 = vmax.f32 %v963, 0.0
        %v980 = vmax.f32 %v879, 0.0
        %v981 = vmax.f32 %v908, 0.0
        %v982 = vmax.f32 %v937, 0.0
        %v983 = vmax.f32 %v966, 0.0
        %s984 = scalar_lea.vmem %s3, 128
        %v985 = vld [vmem:[%s984] sm:$0xff]
        %v986 = vld [vmem:[%s984 + $0x8] sm:$0xff]
        %v987 = vld [vmem:[%s984 + $0x10] sm:$0xff]
        %v988 = vld [vmem:[%s984 + $0x18] sm:$0xff]
        %s989 = scalar_lea.vmem %s4, 128
        %v990 = vld [vmem:[%s989] sm:$0xff]
        %v991 = vld [vmem:[%s989 + $0x8] sm:$0xff]
        %v992 = vld [vmem:[%s989 + $0x10] sm:$0xff]
        %v993 = vld [vmem:[%s989 + $0x18] sm:$0xff]
        %995 = vset.pattern.permute.xlu0 0
        %996 = vperm.xlu0 %995, %v990
        %v997 = vpop.permute.xlu0 %996
        %1000 = vset.pattern.permute.xlu0 0
        %1001 = vperm.xlu0 %1000, %v991
        %v1002 = vpop.permute.xlu0 %1001
        %1004 = vset.pattern.permute.xlu0 0
        %1005 = vperm.xlu0 %1004, %v992
        %v1006 = vpop.permute.xlu0 %1005
        %1008 = vset.pattern.permute.xlu0 0
        %1009 = vperm.xlu0 %1008, %v993
        %v1010 = vpop.permute.xlu0 %1009
        %v1012 = vsel %vm317, %v985, 0
        %v1015 = vsel %vm317, %v986, 0
        %v1018 = vsel %vm317, %v987, 0
        %v1021 = vsel %vm317, %v988, 0
        %1023 = vmatpush.msra.mxu0 0.0
        %1024 = vmatpush.msra.mxu0 0.0
        %1025 = vmatpush.msra.mxu0 0.0
        %1026 = vmatpush.msra.mxu0 0.0
        %1027 = vmatpush.msra.mxu0 0.0
        %1028 = vmatpush.msra.mxu0 0.0
        %1029 = vmatpush.msra.mxu0 0.0
        %1030 = vmatpush.msra.mxu0 0.0
        %1031 = vmatpush.msra.mxu0 0.0
        %1032 = vmatpush.msra.mxu0 0.0
        %1033 = vmatpush.msra.mxu0 0.0
        %1034 = vmatpush.msra.mxu0 0.0
        %1035 = vmatpush.msra.mxu0 %v980
        %1036 = vmatpush.msra.mxu0 %v976
        %1037 = vmatpush.msra.mxu0 %v972
        %1038 = vmatpush.msra.mxu0 %v968
        %1039 = vmatmul.f32.gmra.mxu0 %v1012
        %v1040 = vpop.f32.mrf.mxu0
        %v1041 = vadd.f32 %v997, %v1040
        %1042 = vmatmul.f32.gmra.mxu0 %v1015
        %v1043 = vpop.f32.mrf.mxu0
        %1044 = vmatmul.f32.gmra.mxu0 %v1018
        %v1045 = vpop.f32.mrf.mxu0
        %1046 = vmatmul.f32.gmra.mxu0 %v1021
        %v1047 = vpop.f32.mrf.mxu0
        %1048 = vdwg.mxu0
        %1049 = vmatpush.msra.mxu0 0.0
        %1050 = vmatpush.msra.mxu0 0.0
        %1051 = vmatpush.msra.mxu0 0.0
        %1052 = vmatpush.msra.mxu0 0.0
        %1053 = vmatpush.msra.mxu0 0.0
        %1054 = vmatpush.msra.mxu0 0.0
        %1055 = vmatpush.msra.mxu0 0.0
        %1056 = vmatpush.msra.mxu0 0.0
        %1057 = vmatpush.msra.mxu0 0.0
        %1058 = vmatpush.msra.mxu0 0.0
        %1059 = vmatpush.msra.mxu0 0.0
        %1060 = vmatpush.msra.mxu0 0.0
        %1061 = vmatpush.msra.mxu0 %v981
        %1062 = vmatpush.msra.mxu0 %v977
        %1063 = vmatpush.msra.mxu0 %v973
        %1064 = vmatpush.msra.mxu0 %v969
        %1065 = vmatmul.f32.gmra.mxu0 %v1012
        %v1066 = vpop.f32.mrf.mxu0
        %v1067 = vadd.f32 %v997, %v1066
        %1068 = vmatmul.f32.gmra.mxu0 %v1015
        %v1069 = vpop.f32.mrf.mxu0
        %1070 = vmatmul.f32.gmra.mxu0 %v1018
        %v1071 = vpop.f32.mrf.mxu0
        %1072 = vmatmul.f32.gmra.mxu0 %v1021
        %v1073 = vpop.f32.mrf.mxu0
        %1074 = vdwg.mxu0
        %1075 = vmatpush.msra.mxu0 0.0
        %1076 = vmatpush.msra.mxu0 0.0
        %1077 = vmatpush.msra.mxu0 0.0
        %1078 = vmatpush.msra.mxu0 0.0
        %1079 = vmatpush.msra.mxu0 0.0
        %1080 = vmatpush.msra.mxu0 0.0
        %1081 = vmatpush.msra.mxu0 0.0
        %1082 = vmatpush.msra.mxu0 0.0
        %1083 = vmatpush.msra.mxu0 0.0
        %1084 = vmatpush.msra.mxu0 0.0
        %1085 = vmatpush.msra.mxu0 0.0
        %1086 = vmatpush.msra.mxu0 0.0
        %1087 = vmatpush.msra.mxu0 %v982
        %1088 = vmatpush.msra.mxu0 %v978
        %1089 = vmatpush.msra.mxu0 %v974
        %1090 = vmatpush.msra.mxu0 %v970
        %1091 = vmatmul.f32.gmra.mxu0 %v1012
        %v1092 = vpop.f32.mrf.mxu0
        %v1093 = vadd.f32 %v997, %v1092
        %1094 = vmatmul.f32.gmra.mxu0 %v1015
        %v1095 = vpop.f32.mrf.mxu0
        %1096 = vmatmul.f32.gmra.mxu0 %v1018
        %v1097 = vpop.f32.mrf.mxu0
        %1098 = vmatmul.f32.gmra.mxu0 %v1021
        %v1099 = vpop.f32.mrf.mxu0
        %1100 = vdwg.mxu0
        %1101 = vmatpush.msra.mxu0 0.0
        %1102 = vmatpush.msra.mxu0 0.0
        %1103 = vmatpush.msra.mxu0 0.0
        %1104 = vmatpush.msra.mxu0 0.0
        %1105 = vmatpush.msra.mxu0 0.0
        %1106 = vmatpush.msra.mxu0 0.0
        %1107 = vmatpush.msra.mxu0 0.0
        %1108 = vmatpush.msra.mxu0 0.0
        %1109 = vmatpush.msra.mxu0 0.0
        %1110 = vmatpush.msra.mxu0 0.0
        %1111 = vmatpush.msra.mxu0 0.0
        %1112 = vmatpush.msra.mxu0 0.0
        %1113 = vmatpush.msra.mxu0 %v983
        %1114 = vmatpush.msra.mxu0 %v979
        %1115 = vmatpush.msra.mxu0 %v975
        %1116 = vmatpush.msra.mxu0 %v971
        %1117 = vmatmul.f32.gmra.mxu0 %v1012
        %v1118 = vpop.f32.mrf.mxu0
        %v1119 = vadd.f32 %v997, %v1118
        %1120 = vmatmul.f32.gmra.mxu0 %v1015
        %v1121 = vpop.f32.mrf.mxu0
        %1122 = vmatmul.f32.gmra.mxu0 %v1018
        %v1123 = vpop.f32.mrf.mxu0
        %1124 = vmatmul.f32.gmra.mxu0 %v1021
        %v1125 = vpop.f32.mrf.mxu0
        %1126 = vdwg.mxu0
        %v1127 = vtanh.pop %v1041
        %v1128 = vtanh.pop %v1067
        %v1129 = vtanh.pop %v1093
        %v1130 = vtanh.pop %v1119
        %v1131 = vld [vmem:[%s249] sm:$0xf]
        %v1132 = vld [vmem:[%s2] sm:$0xff]
        %1134 = vset.pattern.permute.xlu0 0
        %1135 = vperm.xlu0 %1134, %v1132
        %v1136 = vpop.permute.xlu0 %1135
        %v1139 = vperm.slane %v1131, 0
        %v1140 = vperm.slane %v1131, 1
        %v1141 = vperm.slane %v1131, 2
        %v1142 = vperm.slane %v1131, 3
        %v1147 = vadd.f32 %v1136, %v1139
        %v1148 = vadd.f32 %v1136, %v1140
        %v1149 = vadd.f32 %v1136, %v1141
        %v1150 = vadd.f32 %v1136, %v1142
        %v1151 = vmul.f32 %v1147, 0.125
        %v1152 = vmul.f32 %v1148, 0.125
        %v1153 = vmul.f32 %v1149, 0.125
        %v1154 = vmul.f32 %v1150, 0.125
        %v1155 = vrot.slane %v1151, 4
        %v1156 = vadd.f32 %v1151, %v1155
        %v1157 = vrot.slane %v1156, 2
        %v1158 = vadd.f32 %v1156, %v1157
        %v1159 = vrot.slane %v1158, 1
        %v1160 = vadd.f32 %v1158, %v1159
        %v1161 = vrot.slane %v1152, 4
        %v1162 = vadd.f32 %v1152, %v1161
        %v1163 = vrot.slane %v1162, 2
        %v1164 = vadd.f32 %v1162, %v1163
        %v1165 = vrot.slane %v1164, 1
        %v1166 = vadd.f32 %v1164, %v1165
        %v1167 = vrot.slane %v1153, 4
        %v1168 = vadd.f32 %v1153, %v1167
        %v1169 = vrot.slane %v1168, 2
        %v1170 = vadd.f32 %v1168, %v1169
        %v1171 = vrot.slane %v1170, 1
        %v1172 = vadd.f32 %v1170, %v1171
        %v1173 = vrot.slane %v1154, 4
        %v1174 = vadd.f32 %v1154, %v1173
        %v1175 = vrot.slane %v1174, 2
        %v1176 = vadd.f32 %v1174, %v1175
        %v1177 = vrot.slane %v1176, 1
        %v1178 = vadd.f32 %v1176, %v1177
        %v1179 = vmul.f32 %v1160, 0.125
        %v1180 = vmul.f32 %v1166, 0.125
        %v1181 = vmul.f32 %v1172, 0.125
        %v1182 = vmul.f32 %v1178, 0.125
        %v1183 = vmul.f32 %v1151, %v1151
        %v1184 = vmul.f32 %v1152, %v1152
        %v1185 = vmul.f32 %v1153, %v1153
        %v1186 = vmul.f32 %v1154, %v1154
        %v1187 = vrot.slane %v1183, 4
        %v1188 = vadd.f32 %v1183, %v1187
        %v1189 = vrot.slane %v1188, 2
        %v1190 = vadd.f32 %v1188, %v1189
        %v1191 = vrot.slane %v1190, 1
        %v1192 = vadd.f32 %v1190, %v1191
        %v1193 = vrot.slane %v1184, 4
        %v1194 = vadd.f32 %v1184, %v1193
        %v1195 = vrot.slane %v1194, 2
        %v1196 = vadd.f32 %v1194, %v1195
        %v1197 = vrot.slane %v1196, 1
        %v1198 = vadd.f32 %v1196, %v1197
        %v1199 = vrot.slane %v1185, 4
        %v1200 = vadd.f32 %v1185, %v1199
        %v1201 = vrot.slane %v1200, 2
        %v1202 = vadd.f32 %v1200, %v1201
        %v1203 = vrot.slane %v1202, 1
        %v1204 = vadd.f32 %v1202, %v1203
        %v1205 = vrot.slane %v1186, 4
        %v1206 = vadd.f32 %v1186, %v1205
        %v1207 = vrot.slane %v1206, 2
        %v1208 = vadd.f32 %v1206, %v1207
        %v1209 = vrot.slane %v1208, 1
        %v1210 = vadd.f32 %v1208, %v1209
        %v1211 = vadd.f32 %v1192, 1e-06
        %v1212 = vadd.f32 %v1198, 1e-06
        %v1213 = vadd.f32 %v1204, 1e-06
        %v1214 = vadd.f32 %v1210, 1e-06
        %v1215 = vmul.f32 %v1211, 0.125001
        %v1216 = vmul.f32 %v1212, 0.125001
        %v1217 = vmul.f32 %v1213, 0.125001
        %v1218 = vmul.f32 %v1214, 0.125001
        %v1219 = vmul.f32 %v1179, %v1179
        %v1220 = vmul.f32 %v1180, %v1180
        %v1221 = vmul.f32 %v1181, %v1181
        %v1222 = vmul.f32 %v1182, %v1182
        %v1223 = vsub.f32 %v1215, %v1219
        %v1224 = vsub.f32 %v1216, %v1220
        %v1225 = vsub.f32 %v1217, %v1221
        %v1226 = vsub.f32 %v1218, %v1222
        %v1227 = vrcp.pop %v1223
        %v1228 = vmul.f32 %v1223, %v1227
        %v1229 = vsub.f32 1.0, %v1228
        %v1230 = vmul.f32 %v1227, %v1229
        %v1231 = vadd.f32 %v1227, %v1230
        %vm1232 = vweird.f32 %v1223
        %vm1233 = vweird.f32 %v1227
        %vm1234 = vmor %vm1232, %vm1233
        %v1235 = vsel %vm1234, %v1227, %v1231
        %v1236 = vand.u32 2147483647, %v1223
        %vm1237 = vcmp.eq.f32.partialorder %v1236, 8.507059e+37
        %v1238 = vand.u32 %v1223, 2147483648
        %v1239 = vor.u32 1.1754944e-38, %v1238
        %v1240 = vsel %vm1237, %v1239, %v1235
        %v1241 = vmul.f32 1.0, %v1240
        %v1242 = vrcp.pop %v1224
        %v1243 = vmul.f32 %v1224, %v1242
        %v1244 = vsub.f32 1.0, %v1243
        %v1245 = vmul.f32 %v1242, %v1244
        %v1246 = vadd.f32 %v1242, %v1245
        %vm1247 = vweird.f32 %v1224
        %vm1248 = vweird.f32 %v1242
        %vm1249 = vmor %vm1247, %vm1248
        %v1250 = vsel %vm1249, %v1242, %v1246
        %v1251 = vand.u32 2147483647, %v1224
        %vm1252 = vcmp.eq.f32.partialorder %v1251, 8.507059e+37
        %v1253 = vand.u32 %v1224, 2147483648
        %v1254 = vor.u32 1.1754944e-38, %v1253
        %v1255 = vsel %vm1252, %v1254, %v1250
        %v1256 = vmul.f32 1.0, %v1255
        %v1257 = vrcp.pop %v1225
        %v1258 = vmul.f32 %v1225, %v1257
        %v1259 = vsub.f32 1.0, %v1258
        %v1260 = vmul.f32 %v1257, %v1259
        %v1261 = vadd.f32 %v1257, %v1260
        %vm1262 = vweird.f32 %v1225
        %vm1263 = vweird.f32 %v1257
        %vm1264 = vmor %vm1262, %vm1263
        %v1265 = vsel %vm1264, %v1257, %v1261
        %v1266 = vand.u32 2147483647, %v1225
        %vm1267 = vcmp.eq.f32.partialorder %v1266, 8.507059e+37
        %v1268 = vand.u32 %v1225, 2147483648
        %v1269 = vor.u32 1.1754944e-38, %v1268
        %v1270 = vsel %vm1267, %v1269, %v1265
        %v1271 = vmul.f32 1.0, %v1270
        %v1272 = vrcp.pop %v1226
        %v1273 = vmul.f32 %v1226, %v1272
        %v1274 = vsub.f32 1.0, %v1273
        %v1275 = vmul.f32 %v1272, %v1274
        %v1276 = vadd.f32 %v1272, %v1275
        %vm1277 = vweird.f32 %v1226
        %vm1278 = vweird.f32 %v1272
        %vm1279 = vmor %vm1277, %vm1278
        %v1280 = vsel %vm1279, %v1272, %v1276
        %v1281 = vand.u32 2147483647, %v1226
        %vm1282 = vcmp.eq.f32.partialorder %v1281, 8.507059e+37
        %v1283 = vand.u32 %v1226, 2147483648
        %v1284 = vor.u32 1.1754944e-38, %v1283
        %v1285 = vsel %vm1282, %v1284, %v1280
        %v1286 = vmul.f32 1.0, %v1285
        %v1287 = vrot.slane %v1127, 4
        %v1288 = vadd.f32 %v1127, %v1287
        %v1289 = vrot.slane %v1288, 2
        %v1290 = vadd.f32 %v1288, %v1289
        %v1291 = vrot.slane %v1290, 1
        %v1292 = vadd.f32 %v1290, %v1291
        %v1293 = vrot.slane %v1128, 4
        %v1294 = vadd.f32 %v1128, %v1293
        %v1295 = vrot.slane %v1294, 2
        %v1296 = vadd.f32 %v1294, %v1295
        %v1297 = vrot.slane %v1296, 1
        %v1298 = vadd.f32 %v1296, %v1297
        %v1299 = vrot.slane %v1129, 4
        %v1300 = vadd.f32 %v1129, %v1299
        %v1301 = vrot.slane %v1300, 2
        %v1302 = vadd.f32 %v1300, %v1301
        %v1303 = vrot.slane %v1302, 1
        %v1304 = vadd.f32 %v1302, %v1303
        %v1305 = vrot.slane %v1130, 4
        %v1306 = vadd.f32 %v1130, %v1305
        %v1307 = vrot.slane %v1306, 2
        %v1308 = vadd.f32 %v1306, %v1307
        %v1309 = vrot.slane %v1308, 1
        %v1310 = vadd.f32 %v1308, %v1309
        %v1311 = vmul.f32 %v1292, 0.125
        %v1312 = vmul.f32 %v1298, 0.125
        %v1313 = vmul.f32 %v1304, 0.125
        %v1314 = vmul.f32 %v1310, 0.125
        %v1315 = vmul.f32 %v1151, %v1127
        %v1316 = vmul.f32 %v1152, %v1128
        %v1317 = vmul.f32 %v1153, %v1129
        %v1318 = vmul.f32 %v1154, %v1130
        %v1319 = vrot.slane %v1315, 4
        %v1320 = vadd.f32 %v1315, %v1319
        %v1321 = vrot.slane %v1320, 2
        %v1322 = vadd.f32 %v1320, %v1321
        %v1323 = vrot.slane %v1322, 1
        %v1324 = vadd.f32 %v1322, %v1323
        %v1325 = vrot.slane %v1316, 4
        %v1326 = vadd.f32 %v1316, %v1325
        %v1327 = vrot.slane %v1326, 2
        %v1328 = vadd.f32 %v1326, %v1327
        %v1329 = vrot.slane %v1328, 1
        %v1330 = vadd.f32 %v1328, %v1329
        %v1331 = vrot.slane %v1317, 4
        %v1332 = vadd.f32 %v1317, %v1331
        %v1333 = vrot.slane %v1332, 2
        %v1334 = vadd.f32 %v1332, %v1333
        %v1335 = vrot.slane %v1334, 1
        %v1336 = vadd.f32 %v1334, %v1335
        %v1337 = vrot.slane %v1318, 4
        %v1338 = vadd.f32 %v1318, %v1337
        %v1339 = vrot.slane %v1338, 2
        %v1340 = vadd.f32 %v1338, %v1339
        %v1341 = vrot.slane %v1340, 1
        %v1342 = vadd.f32 %v1340, %v1341
        %v1343 = vmul.f32 %v1211, %v1311
        %v1344 = vmul.f32 %v1212, %v1312
        %v1345 = vmul.f32 %v1213, %v1313
        %v1346 = vmul.f32 %v1214, %v1314
        %v1347 = vmul.f32 %v1179, %v1324
        %v1348 = vmul.f32 %v1180, %v1330
        %v1349 = vmul.f32 %v1181, %v1336
        %v1350 = vmul.f32 %v1182, %v1342
        %v1351 = vsub.f32 %v1343, %v1347
        %v1352 = vsub.f32 %v1344, %v1348
        %v1353 = vsub.f32 %v1345, %v1349
        %v1354 = vsub.f32 %v1346, %v1350
        %v1355 = vmul.f32 %v1351, %v1241
        %v1356 = vmul.f32 %v1352, %v1256
        %v1357 = vmul.f32 %v1353, %v1271
        %v1358 = vmul.f32 %v1354, %v1286
        %v1359 = vmul.f32 %v1324, 0.125001
        %v1360 = vmul.f32 %v1330, 0.125001
        %v1361 = vmul.f32 %v1336, 0.125001
        %v1362 = vmul.f32 %v1342, 0.125001
        %v1363 = vmul.f32 %v1179, %v1311
        %v1364 = vmul.f32 %v1180, %v1312
        %v1365 = vmul.f32 %v1181, %v1313
        %v1366 = vmul.f32 %v1182, %v1314
        %v1367 = vsub.f32 %v1359, %v1363
        %v1368 = vsub.f32 %v1360, %v1364
        %v1369 = vsub.f32 %v1361, %v1365
        %v1370 = vsub.f32 %v1362, %v1366
        %v1371 = vmul.f32 %v1367, %v1241
        %v1372 = vmul.f32 %v1368, %v1256
        %v1373 = vmul.f32 %v1369, %v1271
        %v1374 = vmul.f32 %v1370, %v1286
        %v1375 = vmul.f32 %v1355, 0.125
        %v1376 = vmul.f32 %v1356, 0.125
        %v1377 = vmul.f32 %v1357, 0.125
        %v1378 = vmul.f32 %v1358, 0.125
        %v1379 = vmul.f32 %v1151, %v1371
        %v1380 = vmul.f32 %v1152, %v1372
        %v1381 = vmul.f32 %v1153, %v1373
        %v1382 = vmul.f32 %v1154, %v1374
        %v1383 = vadd.f32 %v1375, %v1379
        %v1384 = vadd.f32 %v1376, %v1380
        %v1385 = vadd.f32 %v1377, %v1381
        %v1386 = vadd.f32 %v1378, %v1382
        %v1387 = vsub.f32 %v1127, %v1383
        %v1388 = vsub.f32 %v1128, %v1384
        %v1389 = vsub.f32 %v1129, %v1385
        %v1390 = vsub.f32 %v1130, %v1386
        %1391 = vst [vmem:[%s281] sm:$0xff] %v1387
        %1392 = vst [vmem:[%s281 + $0x8] sm:$0xff] %v1388
        %1393 = vst [vmem:[%s281 + $0x10] sm:$0xff] %v1389
        %1394 = vst [vmem:[%s281 + $0x18] sm:$0xff] %v1390
        %s1395 = sand.u32 %s148, 1
        %s1396 = scalar_lea.sflag [#allocation4], %s1395
        %s1397 = sand.u32 %s148, 1
        %s1398 = smul.addr %s1397, 32
        %s1399 = scalar_lea.vmem [#allocation7], %s1398
        // Predicated region
        $region49: #{tpu_custom_call.1} parent=39 // pred_check
          %p1400 = pneg %p158
        $region50: #{tpu_custom_call.1} parent=39 // pred_check_branch
          %1402 = sbr.rel (%p1400) target = $region52
        $region51: #{tpu_custom_call.1} parent=39 // pred_region
          %s1403 = smul.u32 4, %s25
          %1405 = vsyncadd %s1396, 0
          %s1406 = smul.addr %s1403, 8
          %s1407 = scalar_lea.hbm %s5, %s1406
          %s1409 = sshll.u32 %s1399, 4
          %s1410 = int_to_ptr.vmem [resolvable:$true] %s1409
          %s1411 = sshll.u32 %s1407, 4
          %s1412 = int_to_ptr.hbm [resolvable:$true] %s1411
          %1414 = dma.vmem_to_hbm [thread:$0]  %s1410, 512, %s1412, %s1396
        $region52: #{tpu_custom_call.1} parent=39 // pred_fallthru
          _
      $region40: #{tpu_custom_call.1} parent=5 // pred_fallthru
        _
      %p1415 = scmp.le.s32.totalorder 2, %s20
      // Predicated region
      $region53: #{tpu_custom_call.1} parent=5 // pred_check
        %p1416 = pneg %p1415
      $region54: #{tpu_custom_call.1} parent=5 // pred_check_branch
        %1418 = sbr.rel (%p1416) target = $region56
      $region55: #{tpu_custom_call.1} parent=5 // pred_region
        %s1419 = ssub.s32 %s20, 2
        // Predicated region
        $region57: #{tpu_custom_call.1} parent=55 // pred_check
          %p1420 = pneg %p164
        $region58: #{tpu_custom_call.1} parent=55 // pred_check_branch
          %1422 = sbr.rel (%p1420) target = $region60
        $region59: #{tpu_custom_call.1} parent=55 // pred_region
          %s1423 = sand.u32 %s149, 1
          %s1424 = scalar_lea.sflag [#allocation4], %s1423
          %s1425 = sand.u32 %s149, 1
          %s1426 = smul.addr %s1425, 32
          %s1427 = scalar_lea.vmem [#allocation7], %s1426
          %1429 = dma.done %s1424, 512
        $region60: #{tpu_custom_call.1} parent=55 // pred_fallthru
          _
      $region56: #{tpu_custom_call.1} parent=5 // pred_fallthru
        _
    $region6: #{tpu_custom_call.1} parent=1 // loop_footer
      %s24 = sadd.s32 1, %s20
    $region7: #{tpu_custom_call.1} parent=1 // loop_footer_branch
      %19 = sbr.rel target = $region3
    $region8: #{tpu_custom_call.1} parent=1 // loop_exit
      _
    %1430 = vsyncpa [#allocation3], 1
    %s1431 = scalar_lea.sflag [#allocation3], 1
    %1432 = vsyncpa %s1431, 1
    %1433 = vsyncpa [#allocation6], 1
    %s1434 = scalar_lea.sflag [#allocation6], 1
    %1435 = vsyncpa %s1434, 1
    %1436 = vsyncpa [#allocation4], 1
    %s1437 = scalar_lea.sflag [#allocation4], 1
    %1438 = vsyncpa %s1437, 1

</llo_original>
